<compile_context>
chip_gen: v6e
topology: v6e:2x2x1
jax: 0.10.0
libtpu: 0.0.40
codegen_flags: <defaults>
</compile_context>

<pallas_src>
import jax
import jax.numpy as jnp
from jax.experimental import pallas as pl
from jax.experimental.pallas import tpu as pltpu


def mlp_kernel(x_ref, w1_ref, b1_ref, w2_ref, b2_ref, w3_ref, b3_ref, o_ref):
    w1 = w1_ref[...]
    w2 = w2_ref[...]
    w3 = w3_ref[...]

    # Cast x to the matmul dtype inside the kernel (no extra XLA pass over x).
    x = x_ref[...].astype(w1.dtype)

    # Layer 1: Linear (f32 accumulation) + bias + ReLU in f32
    h = jnp.dot(x, w1, preferred_element_type=jnp.float32)
    h = jnp.maximum(h + b1_ref[...], 0.0)

    # Layer 2: Linear + bias + ReLU
    h = jnp.dot(h.astype(w2.dtype), w2, preferred_element_type=jnp.float32)
    h = jnp.maximum(h + b2_ref[...], 0.0)

    # Layer 3: Linear (no activation)
    out = jnp.dot(h.astype(w3.dtype), w3, preferred_element_type=jnp.float32)
    out = out + b3_ref[...]
    o_ref[...] = out.astype(o_ref.dtype)


def _round_up(n, m):
    return ((n + m - 1) // m) * m


def _pad2(a, rows, cols):
    r, c = a.shape
    return jnp.pad(a, ((0, rows - r), (0, cols - c)))


def _cores_per_chip():
    """Dual-TensorCore chips (v7x, v4/v5p megacore) want >=2 parallel grid steps."""
    try:
        kind = jax.devices()[0].device_kind.lower()
    except Exception:
        return 1
    for tag in ("v7", "v4", "v5p"):
        if tag in kind:
            return 2
    return 1


def prepare_params(params, matmul_dtype=jnp.bfloat16):
    """Pad/cast weights ONCE (hoisted out of the forward path).

    params = (w1, b1, w2, b2, w3, b3); wi: [in, out], bi: [1, out].
    Output feature dims are lane-aligned to 128 (zero padding preserves the math:
    padded hidden units are ReLU(0)=0, padded output cols are sliced away). The
    input feature dim of w1 is left un-padded (K does not need lane alignment).
    Biases stay f32 so the bias-add / ReLU epilogue runs in f32 on the VPU.
    """
    w1, b1, w2, b2, w3, b3 = params
    D_in = w1.shape[0]
    D_h1, D_h2, D_out = w1.shape[1], w2.shape[1], w3.shape[1]
    D_h1_p, D_h2_p, D_out_p = (_round_up(d, 128) for d in (D_h1, D_h2, D_out))

    w1_p = _pad2(w1, D_in, D_h1_p).astype(matmul_dtype)
    w2_p = _pad2(w2, D_h1_p, D_h2_p).astype(matmul_dtype)
    w3_p = _pad2(w3, D_h2_p, D_out_p).astype(matmul_dtype)
    b1_p = _pad2(b1, 1, D_h1_p).astype(jnp.float32)
    b2_p = _pad2(b2, 1, D_h2_p).astype(jnp.float32)
    b3_p = _pad2(b3, 1, D_out_p).astype(jnp.float32)
    return (w1_p, b1_p, w2_p, b2_p, w3_p, b3_p)


def mlp_forward(x, padded_params, n_output, *, max_batch_tile=1024):
    """Fused MLP forward. `padded_params` comes from prepare_params()."""
    w1_p, b1_p, w2_p, b2_p, w3_p, b3_p = padded_params
    B, D_in = x.shape
    assert w1_p.shape[0] == D_in, "x feature dim must match w1 rows"
    D_h1_p, D_h2_p, D_out_p = w1_p.shape[1], w2_p.shape[1], w3_p.shape[1]
    out_dtype = x.dtype
    mm_bytes = jnp.dtype(w1_p.dtype).itemsize

    # Batch tiling: one grid step per TensorCore (1 on v5e/v6e, 2 on v7x/megacore),
    # tile rounded to a multiple of 16 sublanes (bf16 packing), capped for VMEM.
    num_cores = _cores_per_chip()
    sub = 16 if mm_bytes < 4 else 8
    per_core = -(-B // num_cores)
    bt = min(_round_up(per_core, sub), _round_up(max_batch_tile, sub))
    B_p = _round_up(B, bt)
    grid = (B_p // bt,)

    # Only the batch dim of x is padded; the feature dim stays D_in (full-extent block).
    x_p = x if B_p == B else jnp.pad(x, ((0, B_p - B), (0, 0)))

    # Advisory cost estimate for XLA's scheduler.
    flops = 2 * B_p * (D_in * D_h1_p + D_h1_p * D_h2_p + D_h2_p * D_out_p)
    bytes_accessed = (
        x_p.size * x_p.dtype.itemsize
        + sum(a.size * a.dtype.itemsize for a in padded_params)
        + B_p * D_out_p * jnp.dtype(out_dtype).itemsize
    )

    # VMEM budget: double-buffered weights/biases + double-buffered x/out tiles
    # + f32 intermediates, plus a few MiB headroom (no 32 MiB floor).
    weight_bytes = 2 * (w1_p.size + w2_p.size + w3_p.size) * mm_bytes
    bias_bytes = 2 * (b1_p.size + b2_p.size + b3_p.size) * 4
    io_bytes = 2 * bt * D_in * x_p.dtype.itemsize + 2 * bt * D_out_p * 4
    act_bytes = bt * (D_h1_p + D_h2_p) * 4 + bt * max(D_h1_p, D_h2_p) * mm_bytes
    need = weight_bytes + bias_bytes + io_bytes + act_bytes
    vmem_limit = int(min(max(need + 4 * 1024 * 1024, 8 * 1024 * 1024),
                         100 * 1024 * 1024))

    out_p = pl.pallas_call(
        mlp_kernel,
        out_shape=jax.ShapeDtypeStruct((B_p, D_out_p), out_dtype),
        grid_spec=pltpu.PrefetchScalarGridSpec(
            num_scalar_prefetch=0,
            grid=grid,
            in_specs=[
                pl.BlockSpec((bt, D_in), lambda i: (i, 0)),      # x tile (full D_in)
                pl.BlockSpec((D_in, D_h1_p), lambda i: (0, 0)),  # w1 (resident)
                pl.BlockSpec((1, D_h1_p), lambda i: (0, 0)),     # b1
                pl.BlockSpec((D_h1_p, D_h2_p), lambda i: (0, 0)),  # w2
                pl.BlockSpec((1, D_h2_p), lambda i: (0, 0)),     # b2
                pl.BlockSpec((D_h2_p, D_out_p), lambda i: (0, 0)),  # w3
                pl.BlockSpec((1, D_out_p), lambda i: (0, 0)),    # b3
            ],
            out_specs=pl.BlockSpec((bt, D_out_p), lambda i: (i, 0)),
        ),
        compiler_params=pltpu.CompilerParams(
            dimension_semantics=("parallel",),
            vmem_limit_bytes=vmem_limit,
        ),
        cost_estimate=pl.CostEstimate(
            flops=flops, transcendentals=0, bytes_accessed=bytes_accessed),
    )(x_p, w1_p, b1_p, w2_p, b2_p, w3_p, b3_p)

    return out_p[:B, :n_output]


def init_linear(key, fan_in, fan_out, dtype=jnp.float32):
    """PyTorch nn.Linear default init: U(-1/sqrt(fan_in), 1/sqrt(fan_in))."""
    kw, kb = jax.random.split(key)
    bound = 1.0 / jnp.sqrt(fan_in)
    # store weight pre-transposed: [in, out]
    w = jax.random.uniform(kw, (fan_in, fan_out), dtype, minval=-bound, maxval=bound)
    b = jax.random.uniform(kb, (1, fan_out), dtype, minval=-bound, maxval=bound)
    return w, b


if __name__ == "__main__":
    # MLP with 2 hidden layers, n_neurons=500 as in the spec (padded to 512 internally).
    batch = 64
    n_input = 24       # stand-in for X.shape[1]
    n_neurons = 500
    n_output = 10      # stand-in for Y.shape[1]
    n_depth = 2
    net_sizes = [n_input] + [n_neurons] * n_depth + [n_output]

    key = jax.random.PRNGKey(0)
    kx, k1, k2, k3 = jax.random.split(key, 4)

    x = jax.random.normal(kx, (batch, n_input), jnp.float32)
    w1, b1 = init_linear(k1, net_sizes[0], net_sizes[1])
    w2, b2 = init_linear(k2, net_sizes[1], net_sizes[2])
    w3, b3 = init_linear(k3, net_sizes[2], net_sizes[3])
    params = (w1, b1, w2, b2, w3, b3)

    # Pad/cast the weights ONCE; reuse padded_params for every forward call.
    padded_params = prepare_params(params, matmul_dtype=jnp.bfloat16)
    padded_params = jax.block_until_ready(padded_params)

    out = mlp_forward(x, padded_params, n_output)
    out = jax.block_until_ready(out)
    assert out.shape == (batch, n_output)

    # Reference mirroring the kernel's numerics (bf16 matmul inputs, f32 accumulation).
    def ref_forward(x, params, mdt=jnp.bfloat16):
        w1, b1, w2, b2, w3, b3 = params
        h = jnp.dot(x.astype(mdt), w1.astype(mdt), preferred_element_type=jnp.float32) + b1
        h = jnp.maximum(h, 0.0)
        h = jnp.dot(h.astype(mdt), w2.astype(mdt), preferred_element_type=jnp.float32) + b2
        h = jnp.maximum(h, 0.0)
        return jnp.dot(h.astype(mdt), w3.astype(mdt), preferred_element_type=jnp.float32) + b3

    ref = ref_forward(x, params)
    assert jnp.allclose(out, ref, atol=2e-2, rtol=2e-2), float(jnp.max(jnp.abs(out - ref)))

    # Looser sanity check against the pure-f32 PyTorch-equivalent forward pass.
    # TODO(synk): for strict f32 parity with the PyTorch Net, call
    # prepare_params(params, matmul_dtype=jnp.float32).
    hf = jnp.maximum(x @ w1 + b1, 0.0)
    hf = jnp.maximum(hf @ w2 + b2, 0.0)
    ref_f32 = hf @ w3 + b3
    assert jnp.allclose(out, ref_f32, atol=1e-1, rtol=1e-1)

    print("KERNEL_OK")
</pallas_src>

<mosaic_0001>
module attributes {stable_mosaic.version = 11 : i64} {
  func.func @mlp_kernel(%arg0: i32, %arg1: memref<64x24xf32, #tpu.memory_space<vmem>>, %arg2: memref<24x512xbf16, #tpu.memory_space<vmem>>, %arg3: memref<1x512xf32, #tpu.memory_space<vmem>>, %arg4: memref<512x512xbf16, #tpu.memory_space<vmem>>, %arg5: memref<1x512xf32, #tpu.memory_space<vmem>>, %arg6: memref<512x128xbf16, #tpu.memory_space<vmem>>, %arg7: memref<1x128xf32, #tpu.memory_space<vmem>>, %arg8: memref<64x128xf32, #tpu.memory_space<vmem>>) attributes {dimension_semantics = [#tpu.dimension_semantics<parallel>], iteration_bounds = array<i64: 1>, scalar_prefetch = 0 : i64, scratch_operands = 0 : i64, tpu.core_type = #tpu.core_type<tc>, window_params = [{transform_indices = @transform_0, window_bounds = array<i64: 64, 24>}, {pipeline_mode = #tpu.pipeline_mode<synchronous>, transform_indices = @transform_1, window_bounds = array<i64: 24, 512>}, {pipeline_mode = #tpu.pipeline_mode<synchronous>, transform_indices = @transform_2, window_bounds = array<i64: 1, 512>}, {pipeline_mode = #tpu.pipeline_mode<synchronous>, transform_indices = @transform_3, window_bounds = array<i64: 512, 512>}, {pipeline_mode = #tpu.pipeline_mode<synchronous>, transform_indices = @transform_4, window_bounds = array<i64: 1, 512>}, {pipeline_mode = #tpu.pipeline_mode<synchronous>, transform_indices = @transform_5, window_bounds = array<i64: 512, 128>}, {pipeline_mode = #tpu.pipeline_mode<synchronous>, transform_indices = @transform_6, window_bounds = array<i64: 1, 128>}, {transform_indices = @transform_7, window_bounds = array<i64: 64, 128>}]} {
    %c0 = arith.constant 0 : index
    %c0_0 = arith.constant 0 : index
    %0 = vector.load %arg2[%c0, %c0_0] : memref<24x512xbf16, #tpu.memory_space<vmem>>, vector<24x512xbf16>
    %c0_1 = arith.constant 0 : index
    %c0_2 = arith.constant 0 : index
    %1 = vector.load %arg4[%c0_1, %c0_2] : memref<512x512xbf16, #tpu.memory_space<vmem>>, vector<512x512xbf16>
    %c0_3 = arith.constant 0 : index
    %c0_4 = arith.constant 0 : index
    %2 = vector.load %arg6[%c0_3, %c0_4] : memref<512x128xbf16, #tpu.memory_space<vmem>>, vector<512x128xbf16>
    %c0_5 = arith.constant 0 : index
    %c0_6 = arith.constant 0 : index
    %3 = vector.load %arg1[%c0_5, %c0_6] : memref<64x24xf32, #tpu.memory_space<vmem>>, vector<64x24xf32>
    %4 = arith.truncf %3 : vector<64x24xf32> to vector<64x24xbf16>
    %cst = arith.constant dense<0.000000e+00> : vector<64x512xf32>
    %5 = tpu.matmul %4, %0, %cst {dimension_numbers = #tpu.dot_dimension_numbers<[1], [0], [0], [1], [0, 0, 1, 1], [], []>} : vector<64x24xbf16>, vector<24x512xbf16>, vector<64x512xf32> -> vector<64x512xf32>
    %c0_7 = arith.constant 0 : index
    %c0_8 = arith.constant 0 : index
    %6 = vector.load %arg3[%c0_7, %c0_8] : memref<1x512xf32, #tpu.memory_space<vmem>>, vector<1x512xf32>
    %7 = vector.broadcast %6 : vector<1x512xf32> to vector<64x512xf32>
    %8 = arith.addf %5, %7 : vector<64x512xf32>
    %cst_9 = arith.constant 0.000000e+00 : f32
    %9 = vector.broadcast %cst_9 : f32 to vector<64x512xf32>
    %10 = arith.maximumf %8, %9 : vector<64x512xf32>
    %11 = arith.truncf %10 : vector<64x512xf32> to vector<64x512xbf16>
    %cst_10 = arith.constant dense<0.000000e+00> : vector<64x512xf32>
    %12 = tpu.matmul %11, %1, %cst_10 {dimension_numbers = #tpu.dot_dimension_numbers<[1], [0], [0], [1], [0, 0, 1, 1], [], []>} : vector<64x512xbf16>, vector<512x512xbf16>, vector<64x512xf32> -> vector<64x512xf32>
    %c0_11 = arith.constant 0 : index
    %c0_12 = arith.constant 0 : index
    %13 = vector.load %arg5[%c0_11, %c0_12] : memref<1x512xf32, #tpu.memory_space<vmem>>, vector<1x512xf32>
    %14 = vector.broadcast %13 : vector<1x512xf32> to vector<64x512xf32>
    %15 = arith.addf %12, %14 : vector<64x512xf32>
    %cst_13 = arith.constant 0.000000e+00 : f32
    %16 = vector.broadcast %cst_13 : f32 to vector<64x512xf32>
    %17 = arith.maximumf %15, %16 : vector<64x512xf32>
    %18 = arith.truncf %17 : vector<64x512xf32> to vector<64x512xbf16>
    %cst_14 = arith.constant dense<0.000000e+00> : vector<64x128xf32>
    %19 = tpu.matmul %18, %2, %cst_14 {dimension_numbers = #tpu.dot_dimension_numbers<[1], [0], [0], [1], [0, 0, 1, 1], [], []>} : vector<64x512xbf16>, vector<512x128xbf16>, vector<64x128xf32> -> vector<64x128xf32>
    %c0_15 = arith.constant 0 : index
    %c0_16 = arith.constant 0 : index
    %20 = vector.load %arg7[%c0_15, %c0_16] : memref<1x128xf32, #tpu.memory_space<vmem>>, vector<1x128xf32>
    %21 = vector.broadcast %20 : vector<1x128xf32> to vector<64x128xf32>
    %22 = arith.addf %19, %21 : vector<64x128xf32>
    %c0_17 = arith.constant 0 : index
    %c0_18 = arith.constant 0 : index
    %23 = vector.load %arg8[%c0_17, %c0_18] : memref<64x128xf32, #tpu.memory_space<vmem>>, vector<64x128xf32>
    tpu.vector_store %arg8[%c0_17, %c0_18], %22 {strides = array<i32>} : memref<64x128xf32, #tpu.memory_space<vmem>>, vector<64x128xf32>,
    return
  }
  func.func @transform_0(%arg0: i32) -> (i32, i32) {
    %c0_i32 = arith.constant 0 : i32
    %c0_i32_0 = arith.constant 0 : i32
    return %arg0, %c0_i32 : i32, i32
  }
  func.func @transform_1(%arg0: i32) -> (i32, i32) {
    %c0_i32 = arith.constant 0 : i32
    %c0_i32_0 = arith.constant 0 : i32
    %c0_i32_1 = arith.constant 0 : i32
    return %c0_i32, %c0_i32_0 : i32, i32
  }
  func.func @transform_2(%arg0: i32) -> (i32, i32) {
    %c0_i32 = arith.constant 0 : i32
    %c0_i32_0 = arith.constant 0 : i32
    %c0_i32_1 = arith.constant 0 : i32
    return %c0_i32, %c0_i32_0 : i32, i32
  }
  func.func @transform_3(%arg0: i32) -> (i32, i32) {
    %c0_i32 = arith.constant 0 : i32
    %c0_i32_0 = arith.constant 0 : i32
    %c0_i32_1 = arith.constant 0 : i32
    return %c0_i32, %c0_i32_0 : i32, i32
  }
  func.func @transform_4(%arg0: i32) -> (i32, i32) {
    %c0_i32 = arith.constant 0 : i32
    %c0_i32_0 = arith.constant 0 : i32
    %c0_i32_1 = arith.constant 0 : i32
    return %c0_i32, %c0_i32_0 : i32, i32
  }
  func.func @transform_5(%arg0: i32) -> (i32, i32) {
    %c0_i32 = arith.constant 0 : i32
    %c0_i32_0 = arith.constant 0 : i32
    %c0_i32_1 = arith.constant 0 : i32
    return %c0_i32, %c0_i32_0 : i32, i32
  }
  func.func @transform_6(%arg0: i32) -> (i32, i32) {
    %c0_i32 = arith.constant 0 : i32
    %c0_i32_0 = arith.constant 0 : i32
    %c0_i32_1 = arith.constant 0 : i32
    return %c0_i32, %c0_i32_0 : i32, i32
  }
  func.func @transform_7(%arg0: i32) -> (i32, i32) {
    %c0_i32 = arith.constant 0 : i32
    %c0_i32_0 = arith.constant 0 : i32
    return %arg0, %c0_i32 : i32, i32
  }
}

</mosaic_0001>

<llo_original>
// kernel: tpu_custom_call.1
$region0: #{tpu_custom_call.1}
  #allocation0 [shape = 'u32[]', space=smem, size = 0x4, offset = 0x4, fixed_abs, tag = 'smem constant byte address 0x4 - core index']
  #allocation1 [shape = 'u32[144,128]{1,0:T(1,128)}', space=vmem, size = 0x12000, scoped, tag = 'internal scratch']
  %s0 = inlined_call_operand.vmem [shape: f32[64,24], index: 0, kind: input, shape index: {}]
  %s1 = inlined_call_operand.vmem [shape: bf16[24,512], index: 1, kind: input, shape index: {}]
  %s2 = inlined_call_operand.vmem [shape: f32[1,512], index: 2, kind: input, shape index: {}]
  %s3 = inlined_call_operand.hbm [shape: bf16[512,512], index: 3, kind: input, shape index: {}]
  %s4 = inlined_call_operand.vmem [shape: f32[1,512], index: 4, kind: input, shape index: {}]
  %s5 = inlined_call_operand.hbm [shape: bf16[512,128], index: 5, kind: input, shape index: {}]
  %s6 = inlined_call_operand.vmem [shape: f32[1,128], index: 6, kind: input, shape index: {}]
  %s7 = inlined_call_operand.hbm [shape: f32[64,128], index: 7, kind: output, shape index: {}]
  %s8 = sld [smem:[#allocation0]]
  $region46: #{tpu_custom_call.1} parent=0
    _
  %s10 = ssub.s32 1, %s8
  %s11 = scalar_select 0, %s10, %s8
  $region1: #{tpu_custom_call.1} parent=0
    #allocation2 [shape = 'u8[524288]{0}', space=vmem, size = 0x80000, scoped, tag = 'input window, operand 3, single buffered']
    #allocation3 [shape = 's32[1]{0}', space=sflag, size = 0x4, scoped, tag = 'scoped memory for tpu_custom_call.1']
    #allocation4 [shape = 's32[1]{0}', space=sflag, size = 0x4, scoped, tag = 'scoped memory for tpu_custom_call.1']
    #allocation5 [shape = 'u8[131072]{0}', space=vmem, size = 0x20000, scoped, tag = 'input window, operand 5, single buffered']
    #allocation6 [shape = 's32[1]{0}', space=sflag, size = 0x4, scoped, tag = 'scoped memory for tpu_custom_call.1']
    #allocation7 [shape = 'u8[32768]{0}', space=vmem, size = 0x8000, scoped, tag = 'output window, operand 0, single buffered']
    %12 = vsyncpa [#allocation3], 0
    %13 = vsyncpa [#allocation6], 0
    %14 = vsyncpa [#allocation4], 0
    // Predicated region
    $region2: #{tpu_custom_call.1} parent=1 // pred_check
      _
    $region3: #{tpu_custom_call.1} parent=1 // pred_check_branch
      %16 = sbr.rel (0) target = $region5
    $region4: #{tpu_custom_call.1} parent=1 // pred_region
      _
    $region5: #{tpu_custom_call.1} parent=1 // pred_fallthru
      _
    // Predicated region
    $region6: #{tpu_custom_call.1} parent=1 // pred_check
      _
    $region7: #{tpu_custom_call.1} parent=1 // pred_check_branch
      %18 = sbr.rel (0) target = $region9
    $region8: #{tpu_custom_call.1} parent=1 // pred_region
      _
    $region9: #{tpu_custom_call.1} parent=1 // pred_fallthru
      _
    // Predicated region
    $region10: #{tpu_custom_call.1} parent=1 // pred_check
      _
    $region11: #{tpu_custom_call.1} parent=1 // pred_check_branch
      %20 = sbr.rel (0) target = $region13
    $region12: #{tpu_custom_call.1} parent=1 // pred_region
      _
    $region13: #{tpu_custom_call.1} parent=1 // pred_fallthru
      _
    // Predicated region
    $region14: #{tpu_custom_call.1} parent=1 // pred_check
      _
    $region15: #{tpu_custom_call.1} parent=1 // pred_check_branch
      %22 = sbr.rel (0) target = $region17
    $region16: #{tpu_custom_call.1} parent=1 // pred_region
      %s24 = ssub.s32 16384, 16384
      %25 = vsyncadd [#allocation3], %s24
      %s26 = sshll.u32 [#allocation2], 4
      %s27 = int_to_ptr.vmem [resolvable:$true] %s26
      %32 = dma.hbm_to_vmem [thread:$0]  %s3, 16384, %s27, [#allocation3], 256, 256, 16
    $region17: #{tpu_custom_call.1} parent=1 // pred_fallthru
      _
    // Predicated region
    $region18: #{tpu_custom_call.1} parent=1 // pred_check
      _
    $region19: #{tpu_custom_call.1} parent=1 // pred_check_branch
      %34 = sbr.rel (0) target = $region21
    $region20: #{tpu_custom_call.1} parent=1 // pred_region
      _
    $region21: #{tpu_custom_call.1} parent=1 // pred_fallthru
      _
    // Predicated region
    $region22: #{tpu_custom_call.1} parent=1 // pred_check
      _
    $region23: #{tpu_custom_call.1} parent=1 // pred_check_branch
      %36 = sbr.rel (0) target = $region25
    $region24: #{tpu_custom_call.1} parent=1 // pred_region
      %s38 = ssub.s32 4096, 4096
      %39 = vsyncadd [#allocation6], %s38
      %s40 = sshll.u32 [#allocation5], 4
      %s41 = int_to_ptr.vmem [resolvable:$true] %s40
      %46 = dma.hbm_to_vmem [thread:$0]  %s5, 4096, %s41, [#allocation6], 64, 64, 4
    $region25: #{tpu_custom_call.1} parent=1 // pred_fallthru
      _
    // Predicated region
    $region26: #{tpu_custom_call.1} parent=1 // pred_check
      _
    $region27: #{tpu_custom_call.1} parent=1 // pred_check_branch
      %48 = sbr.rel (0) target = $region29
    $region28: #{tpu_custom_call.1} parent=1 // pred_region
      _
    $region29: #{tpu_custom_call.1} parent=1 // pred_fallthru
      _
    // Predicated region
    $region30: #{tpu_custom_call.1} parent=1 // pred_check
      _
    $region31: #{tpu_custom_call.1} parent=1 // pred_check_branch
      %50 = sbr.rel (0) target = $region33
    $region32: #{tpu_custom_call.1} parent=1 // pred_region
      %51 = dma.done [#allocation3], 16384
    $region33: #{tpu_custom_call.1} parent=1 // pred_fallthru
      _
    // Predicated region
    $region34: #{tpu_custom_call.1} parent=1 // pred_check
      _
    $region35: #{tpu_custom_call.1} parent=1 // pred_check_branch
      %53 = sbr.rel (0) target = $region37
    $region36: #{tpu_custom_call.1} parent=1 // pred_region
      %54 = dma.done [#allocation6], 4096
    $region37: #{tpu_custom_call.1} parent=1 // pred_fallthru
      _
    %v56 = vld [vmem:[%s1] sm:$0xff]
    %v57 = vld [vmem:[%s1 + $0x8] sm:$0xff]
    %v58 = vld [vmem:[%s1 + $0x10] sm:$0xff]
    %v59 = vld [vmem:[%s1 + $0x18] sm:$0xff]
    %v60 = vld [vmem:[%s1 + $0x20] sm:$0xff]
    %v61 = vld [vmem:[%s1 + $0x28] sm:$0xff]
    %v62 = vld [vmem:[#allocation2] sm:$0xff]
    %v63 = vld [vmem:[#allocation2 + $0x8] sm:$0xff]
    %v64 = vld [vmem:[#allocation2 + $0x10] sm:$0xff]
    %v65 = vld [vmem:[#allocation2 + $0x18] sm:$0xff]
    %v66 = vld [vmem:[#allocation2 + $0x20] sm:$0xff]
    %v67 = vld [vmem:[#allocation2 + $0x28] sm:$0xff]
    %v68 = vld [vmem:[#allocation2 + $0x30] sm:$0xff]
    %v69 = vld [vmem:[#allocation2 + $0x38] sm:$0xff]
    %v70 = vld [vmem:[#allocation2 + $0x40] sm:$0xff]
    %v71 = vld [vmem:[#allocation2 + $0x48] sm:$0xff]
    %v72 = vld [vmem:[#allocation2 + $0x50] sm:$0xff]
    %v73 = vld [vmem:[#allocation2 + $0x58] sm:$0xff]
    %v74 = vld [vmem:[#allocation2 + $0x60] sm:$0xff]
    %v75 = vld [vmem:[#allocation2 + $0x68] sm:$0xff]
    %v76 = vld [vmem:[#allocation2 + $0x70] sm:$0xff]
    %v77 = vld [vmem:[#allocation2 + $0x78] sm:$0xff]
    %v78 = vld [vmem:[#allocation2 + $0x80] sm:$0xff]
    %v79 = vld [vmem:[#allocation2 + $0x88] sm:$0xff]
    %v80 = vld [vmem:[#allocation2 + $0x90] sm:$0xff]
    %v81 = vld [vmem:[#allocation2 + $0x98] sm:$0xff]
    %v82 = vld [vmem:[#allocation2 + $0xa0] sm:$0xff]
    %v83 = vld [vmem:[#allocation2 + $0xa8] sm:$0xff]
    %v84 = vld [vmem:[#allocation2 + $0xb0] sm:$0xff]
    %v85 = vld [vmem:[#allocation2 + $0xb8] sm:$0xff]
    %v86 = vld [vmem:[#allocation2 + $0xc0] sm:$0xff]
    %v87 = vld [vmem:[#allocation2 + $0xc8] sm:$0xff]
    %v88 = vld [vmem:[#allocation2 + $0xd0] sm:$0xff]
    %v89 = vld [vmem:[#allocation2 + $0xd8] sm:$0xff]
    %v90 = vld [vmem:[#allocation2 + $0xe0] sm:$0xff]
    %v91 = vld [vmem:[#allocation2 + $0xe8] sm:$0xff]
    %v92 = vld [vmem:[#allocation2 + $0xf0] sm:$0xff]
    %v93 = vld [vmem:[#allocation2 + $0xf8] sm:$0xff]
    %v94 = vld [vmem:[#allocation2 + $0x100] sm:$0xff]
    %v95 = vld [vmem:[#allocation2 + $0x108] sm:$0xff]
    %v96 = vld [vmem:[#allocation2 + $0x110] sm:$0xff]
    %v97 = vld [vmem:[#allocation2 + $0x118] sm:$0xff]
    %v98 = vld [vmem:[#allocation2 + $0x120] sm:$0xff]
    %v99 = vld [vmem:[#allocation2 + $0x128] sm:$0xff]
    %v100 = vld [vmem:[#allocation2 + $0x130] sm:$0xff]
    %v101 = vld [vmem:[#allocation2 + $0x138] sm:$0xff]
    %v102 = vld [vmem:[#allocation2 + $0x140] sm:$0xff]
    %v103 = vld [vmem:[#allocation2 + $0x148] sm:$0xff]
    %v104 = vld [vmem:[#allocation2 + $0x150] sm:$0xff]
    %v105 = vld [vmem:[#allocation2 + $0x158] sm:$0xff]
    %v106 = vld [vmem:[#allocation2 + $0x160] sm:$0xff]
    %v107 = vld [vmem:[#allocation2 + $0x168] sm:$0xff]
    %v108 = vld [vmem:[#allocation2 + $0x170] sm:$0xff]
    %v109 = vld [vmem:[#allocation2 + $0x178] sm:$0xff]
    %v110 = vld [vmem:[#allocation2 + $0x180] sm:$0xff]
    %v111 = vld [vmem:[#allocation2 + $0x188] sm:$0xff]
    %v112 = vld [vmem:[#allocation2 + $0x190] sm:$0xff]
    %v113 = vld [vmem:[#allocation2 + $0x198] sm:$0xff]
    %v114 = vld [vmem:[#allocation2 + $0x1a0] sm:$0xff]
    %v115 = vld [vmem:[#allocation2 + $0x1a8] sm:$0xff]
    %v116 = vld [vmem:[#allocation2 + $0x1b0] sm:$0xff]
    %v117 = vld [vmem:[#allocation2 + $0x1b8] sm:$0xff]
    %v118 = vld [vmem:[#allocation2 + $0x1c0] sm:$0xff]
    %v119 = vld [vmem:[#allocation2 + $0x1c8] sm:$0xff]
    %v120 = vld [vmem:[#allocation2 + $0x1d0] sm:$0xff]
    %v121 = vld [vmem:[#allocation2 + $0x1d8] sm:$0xff]
    %v122 = vld [vmem:[#allocation2 + $0x1e0] sm:$0xff]
    %v123 = vld [vmem:[#allocation2 + $0x1e8] sm:$0xff]
    %v124 = vld [vmem:[#allocation2 + $0x1f0] sm:$0xff]
    %v125 = vld [vmem:[#allocation2 + $0x1f8] sm:$0xff]
    %v126 = vld [vmem:[#allocation2 + $0x200] sm:$0xff]
    %v127 = vld [vmem:[#allocation2 + $0x208] sm:$0xff]
    %v128 = vld [vmem:[#allocation2 + $0x210] sm:$0xff]
    %v129 = vld [vmem:[#allocation2 + $0x218] sm:$0xff]
    %v130 = vld [vmem:[#allocation2 + $0x220] sm:$0xff]
    %v131 = vld [vmem:[#allocation2 + $0x228] sm:$0xff]
    %v132 = vld [vmem:[#allocation2 + $0x230] sm:$0xff]
    %v133 = vld [vmem:[#allocation2 + $0x238] sm:$0xff]
    %v134 = vld [vmem:[#allocation2 + $0x240] sm:$0xff]
    %v135 = vld [vmem:[#allocation2 + $0x248] sm:$0xff]
    %v136 = vld [vmem:[#allocation2 + $0x250] sm:$0xff]
    %v137 = vld [vmem:[#allocation2 + $0x258] sm:$0xff]
    %v138 = vld [vmem:[#allocation2 + $0x260] sm:$0xff]
    %v139 = vld [vmem:[#allocation2 + $0x268] sm:$0xff]
    %v140 = vld [vmem:[#allocation2 + $0x270] sm:$0xff]
    %v141 = vld [vmem:[#allocation2 + $0x278] sm:$0xff]
    %v142 = vld [vmem:[#allocation2 + $0x280] sm:$0xff]
    %v143 = vld [vmem:[#allocation2 + $0x288] sm:$0xff]
    %v144 = vld [vmem:[#allocation2 + $0x290] sm:$0xff]
    %v145 = vld [vmem:[#allocation2 + $0x298] sm:$0xff]
    %v146 = vld [vmem:[#allocation2 + $0x2a0] sm:$0xff]
    %v147 = vld [vmem:[#allocation2 + $0x2a8] sm:$0xff]
    %v148 = vld [vmem:[#allocation2 + $0x2b0] sm:$0xff]
    %v149 = vld [vmem:[#allocation2 + $0x2b8] sm:$0xff]
    %v150 = vld [vmem:[#allocation2 + $0x2c0] sm:$0xff]
    %v151 = vld [vmem:[#allocation2 + $0x2c8] sm:$0xff]
    %v152 = vld [vmem:[#allocation2 + $0x2d0] sm:$0xff]
    %v153 = vld [vmem:[#allocation2 + $0x2d8] sm:$0xff]
    %v154 = vld [vmem:[#allocation2 + $0x2e0] sm:$0xff]
    %v155 = vld [vmem:[#allocation2 + $0x2e8] sm:$0xff]
    %v156 = vld [vmem:[#allocation2 + $0x2f0] sm:$0xff]
    %v157 = vld [vmem:[#allocation2 + $0x2f8] sm:$0xff]
    %v158 = vld [vmem:[#allocation2 + $0x300] sm:$0xff]
    %v159 = vld [vmem:[#allocation2 + $0x308] sm:$0xff]
    %v160 = vld [vmem:[#allocation2 + $0x310] sm:$0xff]
    %v161 = vld [vmem:[#allocation2 + $0x318] sm:$0xff]
    %v162 = vld [vmem:[#allocation2 + $0x320] sm:$0xff]
    %v163 = vld [vmem:[#allocation2 + $0x328] sm:$0xff]
    %v164 = vld [vmem:[#allocation2 + $0x330] sm:$0xff]
    %v165 = vld [vmem:[#allocation2 + $0x338] sm:$0xff]
    %v166 = vld [vmem:[#allocation2 + $0x340] sm:$0xff]
    %v167 = vld [vmem:[#allocation2 + $0x348] sm:$0xff]
    %v168 = vld [vmem:[#allocation2 + $0x350] sm:$0xff]
    %v169 = vld [vmem:[#allocation2 + $0x358] sm:$0xff]
    %v170 = vld [vmem:[#allocation2 + $0x360] sm:$0xff]
    %v171 = vld [vmem:[#allocation2 + $0x368] sm:$0xff]
    %v172 = vld [vmem:[#allocation2 + $0x370] sm:$0xff]
    %v173 = vld [vmem:[#allocation2 + $0x378] sm:$0xff]
    %v174 = vld [vmem:[#allocation2 + $0x380] sm:$0xff]
    %v175 = vld [vmem:[#allocation2 + $0x388] sm:$0xff]
    %v176 = vld [vmem:[#allocation2 + $0x390] sm:$0xff]
    %v177 = vld [vmem:[#allocation2 + $0x398] sm:$0xff]
    %v178 = vld [vmem:[#allocation2 + $0x3a0] sm:$0xff]
    %v179 = vld [vmem:[#allocation2 + $0x3a8] sm:$0xff]
    %v180 = vld [vmem:[#allocation2 + $0x3b0] sm:$0xff]
    %v181 = vld [vmem:[#allocation2 + $0x3b8] sm:$0xff]
    %v182 = vld [vmem:[#allocation2 + $0x3c0] sm:$0xff]
    %v183 = vld [vmem:[#allocation2 + $0x3c8] sm:$0xff]
    %v184 = vld [vmem:[#allocation2 + $0x3d0] sm:$0xff]
    %v185 = vld [vmem:[#allocation2 + $0x3d8] sm:$0xff]
    %v186 = vld [vmem:[#allocation2 + $0x3e0] sm:$0xff]
    %v187 = vld [vmem:[#allocation2 + $0x3e8] sm:$0xff]
    %v188 = vld [vmem:[#allocation2 + $0x3f0] sm:$0xff]
    %v189 = vld [vmem:[#allocation2 + $0x3f8] sm:$0xff]
    %v190 = vld [vmem:[#allocation5] sm:$0xf]
    %v191 = vld [vmem:[#allocation5 + $0x4] sm:$0xf]
    %v192 = vld [vmem:[#allocation5 + $0x8] sm:$0xf]
    %v193 = vld [vmem:[#allocation5 + $0xc] sm:$0xf]
    %v194 = vld [vmem:[#allocation5 + $0x10] sm:$0xf]
    %v195 = vld [vmem:[#allocation5 + $0x14] sm:$0xf]
    %v196 = vld [vmem:[#allocation5 + $0x18] sm:$0xf]
    %v197 = vld [vmem:[#allocation5 + $0x1c] sm:$0xf]
    %v198 = vld [vmem:[#allocation5 + $0x20] sm:$0xf]
    %v199 = vld [vmem:[#allocation5 + $0x24] sm:$0xf]
    %v200 = vld [vmem:[#allocation5 + $0x28] sm:$0xf]
    %v201 = vld [vmem:[#allocation5 + $0x2c] sm:$0xf]
    %v202 = vld [vmem:[#allocation5 + $0x30] sm:$0xf]
    %v203 = vld [vmem:[#allocation5 + $0x34] sm:$0xf]
    %v204 = vld [vmem:[#allocation5 + $0x38] sm:$0xf]
    %v205 = vld [vmem:[#allocation5 + $0x3c] sm:$0xf]
    %v206 = vld [vmem:[#allocation5 + $0x40] sm:$0xf]
    %v207 = vld [vmem:[#allocation5 + $0x44] sm:$0xf]
    %v208 = vld [vmem:[#allocation5 + $0x48] sm:$0xf]
    %v209 = vld [vmem:[#allocation5 + $0x4c] sm:$0xf]
    %v210 = vld [vmem:[#allocation5 + $0x50] sm:$0xf]
    %v211 = vld [vmem:[#allocation5 + $0x54] sm:$0xf]
    %v212 = vld [vmem:[#allocation5 + $0x58] sm:$0xf]
    %v213 = vld [vmem:[#allocation5 + $0x5c] sm:$0xf]
    %v214 = vld [vmem:[#allocation5 + $0x60] sm:$0xf]
    %v215 = vld [vmem:[#allocation5 + $0x64] sm:$0xf]
    %v216 = vld [vmem:[#allocation5 + $0x68] sm:$0xf]
    %v217 = vld [vmem:[#allocation5 + $0x6c] sm:$0xf]
    %v218 = vld [vmem:[#allocation5 + $0x70] sm:$0xf]
    %v219 = vld [vmem:[#allocation5 + $0x74] sm:$0xf]
    %v220 = vld [vmem:[#allocation5 + $0x78] sm:$0xf]
    %v221 = vld [vmem:[#allocation5 + $0x7c] sm:$0xf]
    %v222 = vld [vmem:[#allocation5 + $0x80] sm:$0xf]
    %v223 = vld [vmem:[#allocation5 + $0x84] sm:$0xf]
    %v224 = vld [vmem:[#allocation5 + $0x88] sm:$0xf]
    %v225 = vld [vmem:[#allocation5 + $0x8c] sm:$0xf]
    %v226 = vld [vmem:[#allocation5 + $0x90] sm:$0xf]
    %v227 = vld [vmem:[#allocation5 + $0x94] sm:$0xf]
    %v228 = vld [vmem:[#allocation5 + $0x98] sm:$0xf]
    %v229 = vld [vmem:[#allocation5 + $0x9c] sm:$0xf]
    %v230 = vld [vmem:[#allocation5 + $0xa0] sm:$0xf]
    %v231 = vld [vmem:[#allocation5 + $0xa4] sm:$0xf]
    %v232 = vld [vmem:[#allocation5 + $0xa8] sm:$0xf]
    %v233 = vld [vmem:[#allocation5 + $0xac] sm:$0xf]
    %v234 = vld [vmem:[#allocation5 + $0xb0] sm:$0xf]
    %v235 = vld [vmem:[#allocation5 + $0xb4] sm:$0xf]
    %v236 = vld [vmem:[#allocation5 + $0xb8] sm:$0xf]
    %v237 = vld [vmem:[#allocation5 + $0xbc] sm:$0xf]
    %v238 = vld [vmem:[#allocation5 + $0xc0] sm:$0xf]
    %v239 = vld [vmem:[#allocation5 + $0xc4] sm:$0xf]
    %v240 = vld [vmem:[#allocation5 + $0xc8] sm:$0xf]
    %v241 = vld [vmem:[#allocation5 + $0xcc] sm:$0xf]
    %v242 = vld [vmem:[#allocation5 + $0xd0] sm:$0xf]
    %v243 = vld [vmem:[#allocation5 + $0xd4] sm:$0xf]
    %v244 = vld [vmem:[#allocation5 + $0xd8] sm:$0xf]
    %v245 = vld [vmem:[#allocation5 + $0xdc] sm:$0xf]
    %v246 = vld [vmem:[#allocation5 + $0xe0] sm:$0xf]
    %v247 = vld [vmem:[#allocation5 + $0xe4] sm:$0xf]
    %v248 = vld [vmem:[#allocation5 + $0xe8] sm:$0xf]
    %v249 = vld [vmem:[#allocation5 + $0xec] sm:$0xf]
    %v250 = vld [vmem:[#allocation5 + $0xf0] sm:$0xf]
    %v251 = vld [vmem:[#allocation5 + $0xf4] sm:$0xf]
    %v252 = vld [vmem:[#allocation5 + $0xf8] sm:$0xf]
    %v253 = vld [vmem:[#allocation5 + $0xfc] sm:$0xf]
    %v254 = vld [vmem:[%s0] sm:$0xff]
    %v255 = vld [vmem:[%s0 + $0x8] sm:$0xff]
    %v256 = vld [vmem:[%s0 + $0x10] sm:$0xff]
    %v257 = vld [vmem:[%s0 + $0x18] sm:$0xff]
    %v258 = vld [vmem:[%s0 + $0x20] sm:$0xff]
    %v259 = vld [vmem:[%s0 + $0x28] sm:$0xff]
    %v260 = vld [vmem:[%s0 + $0x30] sm:$0xff]
    %v261 = vld [vmem:[%s0 + $0x38] sm:$0xff]
    %v262 = vpack.c.bf16 %v255, %v254
    %v263 = vpack.c.bf16 %v257, %v256
    %v264 = vpack.c.bf16 %v259, %v258
    %v265 = vpack.c.bf16 %v261, %v260
    %v266 = vld [vmem:[%s2] sm:$0xf]
    %v268 = vlaneseq
    %v269 = vshrl.u32 %v268, 7
    %v270 = vsub.s32 0, %v269
    %v271 = vrot.slane %v266, %v270
    %v272 = vlaneseq
    %v273 = vshrl.u32 %v272, 7
    %v274 = vsub.s32 1, %v273
    %v275 = vrot.slane %v266, %v274
    %v276 = vlaneseq
    %v277 = vshrl.u32 %v276, 7
    %v278 = vsub.s32 2, %v277
    %v279 = vrot.slane %v266, %v278
    %v280 = vlaneseq
    %v281 = vshrl.u32 %v280, 7
    %v282 = vsub.s32 3, %v281
    %v283 = vrot.slane %v266, %v282
    %v294 = vunpack.c.l.b16 %v56
    %v295 = vunpack.c.h.b16 %v56
    %v296 = vunpack.c.l.b16 %v57
    %v297 = vunpack.c.h.b16 %v57
    %v298 = vunpack.c.l.b16 %v58
    %v299 = vunpack.c.h.b16 %v58
    %v300 = vunpack.c.l.b16 %v59
    %v301 = vunpack.c.h.b16 %v59
    %v302 = vunpack.c.l.b16 %v60
    %v303 = vunpack.c.h.b16 %v60
    %v304 = vunpack.c.l.b16 %v61
    %v305 = vunpack.c.h.b16 %v61
    %v306 = vpack.c.b16 %v298, %v294
    %v307 = vpack.c.b16 %v299, %v295
    %v308 = vpack.c.b16 %v300, %v296
    %v309 = vpack.c.b16 %v301, %v297
    %v310 = vpack.c.b16 %v302, %v302
    %v311 = vpack.c.b16 %v303, %v303
    %v312 = vpack.c.b16 %v304, %v304
    %v313 = vpack.c.b16 %v305, %v305
    %vm318 = vcmask 195584
    %v320 = vsel %vm318, %v262, 0
    %v323 = vsel %vm318, %v263, 0
    %v326 = vsel %vm318, %v264, 0
    %v329 = vsel %vm318, %v265, 0
    %vm331 = vcmask 1043456
    %v333 = vsel %vm331, %v310, 0
    %v336 = vsel %vm331, %v311, 0
    %v339 = vsel %vm331, %v312, 0
    %v342 = vsel %vm331, %v313, 0
    %344 = vmatprep.subr.bf16.mxu0 0
    %345 = vmatpush1.bf16.msra.mxu0 0
    %346 = vmatprep.subr.bf16.mxu0 0
    %347 = vmatpush1.bf16.msra.mxu0 0
    %348 = vmatprep.subr.bf16.mxu0 0
    %349 = vmatpush1.bf16.msra.mxu0 0
    %350 = vmatprep.subr.bf16.mxu0 0
    %351 = vmatpush1.bf16.msra.mxu0 0
    %352 = vmatprep.subr.bf16.mxu0 0
    %353 = vmatpush1.bf16.msra.mxu0 0
    %354 = vmatprep.subr.bf16.mxu0 0
    %355 = vmatpush1.bf16.msra.mxu0 0
    %356 = vmatprep.subr.bf16.mxu0 %v336
    %357 = vmatpush1.bf16.msra.mxu0 %v333
    %358 = vmatprep.subr.bf16.mxu0 %v307
    %359 = vmatpush1.bf16.msra.mxu0 %v306
    %360 = vmatprep.subr.bf16.mxu0 0
    %361 = vmatpush2.bf16.msra.mxu0 0
    %362 = vmatprep.subr.bf16.mxu0 0
    %363 = vmatpush2.bf16.msra.mxu0 0
    %364 = vmatprep.subr.bf16.mxu0 0
    %365 = vmatpush2.bf16.msra.mxu0 0
    %366 = vmatprep.subr.bf16.mxu0 0
    %367 = vmatpush2.bf16.msra.mxu0 0
    %368 = vmatprep.subr.bf16.mxu0 0
    %369 = vmatpush2.bf16.msra.mxu0 0
    %370 = vmatprep.subr.bf16.mxu0 0
    %371 = vmatpush2.bf16.msra.mxu0 0
    %372 = vmatprep.subr.bf16.mxu0 0
    %373 = vmatpush2.bf16.msra.mxu0 0
    %374 = vmatprep.subr.bf16.mxu0 0
    %375 = vmatpush2.bf16.msra.mxu0 0
    %376 = vmatprep.mubr.bf16.mxu0 0
    %377 = vmatmul.mubr.bf16.gmra.mxu0 %v320
    %v378 = vpop.f32.mrf.mxu0
    %v379 = vadd.f32 %v271, %v378
    %v380 = vpop.f32.mrf.mxu0
    %v381 = vadd.f32 %v275, %v380
    %v382 = vpop.f32.mrf.mxu0
    %v383 = vadd.f32 %v271, %v382
    %v384 = vpop.f32.mrf.mxu0
    %v385 = vadd.f32 %v275, %v384
    %386 = vmatprep.mubr.bf16.mxu0 0
    %387 = vmatmul.mubr.bf16.gmra.mxu0 %v323
    %v388 = vpop.f32.mrf.mxu0
    %v389 = vadd.f32 %v271, %v388
    %v390 = vpop.f32.mrf.mxu0
    %v391 = vadd.f32 %v275, %v390
    %v392 = vpop.f32.mrf.mxu0
    %v393 = vadd.f32 %v271, %v392
    %v394 = vpop.f32.mrf.mxu0
    %v395 = vadd.f32 %v275, %v394
    %396 = vmatprep.mubr.bf16.mxu0 0
    %397 = vmatmul.mubr.bf16.gmra.mxu0 %v326
    %v398 = vpop.f32.mrf.mxu0
    %v399 = vadd.f32 %v271, %v398
    %v400 = vpop.f32.mrf.mxu0
    %v401 = vadd.f32 %v275, %v400
    %v402 = vpop.f32.mrf.mxu0
    %v403 = vadd.f32 %v271, %v402
    %v404 = vpop.f32.mrf.mxu0
    %v405 = vadd.f32 %v275, %v404
    %406 = vmatprep.mubr.bf16.mxu0 0
    %407 = vmatmul.mubr.bf16.gmra.mxu0 %v329
    %v408 = vpop.f32.mrf.mxu0
    %v409 = vadd.f32 %v271, %v408
    %v410 = vpop.f32.mrf.mxu0
    %v411 = vadd.f32 %v275, %v410
    %v412 = vpop.f32.mrf.mxu0
    %v413 = vadd.f32 %v271, %v412
    %v414 = vpop.f32.mrf.mxu0
    %v415 = vadd.f32 %v275, %v414
    %416 = vdwg.mxu0
    %417 = vmatprep.subr.bf16.mxu0 0
    %418 = vmatpush1.bf16.msra.mxu0 0
    %419 = vmatprep.subr.bf16.mxu0 0
    %420 = vmatpush1.bf16.msra.mxu0 0
    %421 = vmatprep.subr.bf16.mxu0 0
    %422 = vmatpush1.bf16.msra.mxu0 0
    %423 = vmatprep.subr.bf16.mxu0 0
    %424 = vmatpush1.bf16.msra.mxu0 0
    %425 = vmatprep.subr.bf16.mxu0 0
    %426 = vmatpush1.bf16.msra.mxu0 0
    %427 = vmatprep.subr.bf16.mxu0 0
    %428 = vmatpush1.bf16.msra.mxu0 0
    %429 = vmatprep.subr.bf16.mxu0 %v342
    %430 = vmatpush1.bf16.msra.mxu0 %v339
    %431 = vmatprep.subr.bf16.mxu0 %v309
    %432 = vmatpush1.bf16.msra.mxu0 %v308
    %433 = vmatprep.subr.bf16.mxu0 0
    %434 = vmatpush2.bf16.msra.mxu0 0
    %435 = vmatprep.subr.bf16.mxu0 0
    %436 = vmatpush2.bf16.msra.mxu0 0
    %437 = vmatprep.subr.bf16.mxu0 0
    %438 = vmatpush2.bf16.msra.mxu0 0
    %439 = vmatprep.subr.bf16.mxu0 0
    %440 = vmatpush2.bf16.msra.mxu0 0
    %441 = vmatprep.subr.bf16.mxu0 0
    %442 = vmatpush2.bf16.msra.mxu0 0
    %443 = vmatprep.subr.bf16.mxu0 0
    %444 = vmatpush2.bf16.msra.mxu0 0
    %445 = vmatprep.subr.bf16.mxu0 0
    %446 = vmatpush2.bf16.msra.mxu0 0
    %447 = vmatprep.subr.bf16.mxu0 0
    %448 = vmatpush2.bf16.msra.mxu0 0
    %449 = vmatprep.mubr.bf16.mxu0 0
    %450 = vmatmul.mubr.bf16.gmra.mxu0 %v320
    %v451 = vpop.f32.mrf.mxu0
    %v452 = vadd.f32 %v279, %v451
    %v453 = vpop.f32.mrf.mxu0
    %v454 = vadd.f32 %v283, %v453
    %v455 = vpop.f32.mrf.mxu0
    %v456 = vadd.f32 %v279, %v455
    %v457 = vpop.f32.mrf.mxu0
    %v458 = vadd.f32 %v283, %v457
    %459 = vmatprep.mubr.bf16.mxu0 0
    %460 = vmatmul.mubr.bf16.gmra.mxu0 %v323
    %v461 = vpop.f32.mrf.mxu0
    %v462 = vadd.f32 %v279, %v461
    %v463 = vpop.f32.mrf.mxu0
    %v464 = vadd.f32 %v283, %v463
    %v465 = vpop.f32.mrf.mxu0
    %v466 = vadd.f32 %v279, %v465
    %v467 = vpop.f32.mrf.mxu0
    %v468 = vadd.f32 %v283, %v467
    %469 = vmatprep.mubr.bf16.mxu0 0
    %470 = vmatmul.mubr.bf16.gmra.mxu0 %v326
    %v471 = vpop.f32.mrf.mxu0
    %v472 = vadd.f32 %v279, %v471
    %v473 = vpop.f32.mrf.mxu0
    %v474 = vadd.f32 %v283, %v473
    %v475 = vpop.f32.mrf.mxu0
    %v476 = vadd.f32 %v279, %v475
    %v477 = vpop.f32.mrf.mxu0
    %v478 = vadd.f32 %v283, %v477
    %479 = vmatprep.mubr.bf16.mxu0 0
    %480 = vmatmul.mubr.bf16.gmra.mxu0 %v329
    %v481 = vpop.f32.mrf.mxu0
    %v482 = vadd.f32 %v279, %v481
    %v483 = vpop.f32.mrf.mxu0
    %v484 = vadd.f32 %v283, %v483
    %v485 = vpop.f32.mrf.mxu0
    %v486 = vadd.f32 %v279, %v485
    %v487 = vpop.f32.mrf.mxu0
    %v488 = vadd.f32 %v283, %v487
    %489 = vdwg.mxu0
    %v490 = vmax.f32 %v379, 0.0
    %v491 = vmax.f32 %v381, 0.0
    %v492 = vmax.f32 %v452, 0.0
    %v493 = vmax.f32 %v454, 0.0
    %v494 = vmax.f32 %v383, 0.0
    %v495 = vmax.f32 %v385, 0.0
    %v496 = vmax.f32 %v456, 0.0
    %v497 = vmax.f32 %v458, 0.0
    %v498 = vmax.f32 %v389, 0.0
    %v499 = vmax.f32 %v391, 0.0
    %v500 = vmax.f32 %v462, 0.0
    %v501 = vmax.f32 %v464, 0.0
    %v502 = vmax.f32 %v393, 0.0
    %v503 = vmax.f32 %v395, 0.0
    %v504 = vmax.f32 %v466, 0.0
    %v505 = vmax.f32 %v468, 0.0
    %v506 = vmax.f32 %v399, 0.0
    %v507 = vmax.f32 %v401, 0.0
    %v508 = vmax.f32 %v472, 0.0
    %v509 = vmax.f32 %v474, 0.0
    %v510 = vmax.f32 %v403, 0.0
    %v511 = vmax.f32 %v405, 0.0
    %v512 = vmax.f32 %v476, 0.0
    %v513 = vmax.f32 %v478, 0.0
    %v514 = vmax.f32 %v409, 0.0
    %v515 = vmax.f32 %v411, 0.0
    %v516 = vmax.f32 %v482, 0.0
    %v517 = vmax.f32 %v484, 0.0
    %v518 = vmax.f32 %v413, 0.0
    %v519 = vmax.f32 %v415, 0.0
    %v520 = vmax.f32 %v486, 0.0
    %v521 = vmax.f32 %v488, 0.0
    %v522 = vpack.c.bf16 %v494, %v490
    %v523 = vpack.c.bf16 %v495, %v491
    %v524 = vpack.c.bf16 %v496, %v492
    %v525 = vpack.c.bf16 %v497, %v493
    %v526 = vpack.c.bf16 %v502, %v498
    %v527 = vpack.c.bf16 %v503, %v499
    %v528 = vpack.c.bf16 %v504, %v500
    %v529 = vpack.c.bf16 %v505, %v501
    %v530 = vpack.c.bf16 %v510, %v506
    %v531 = vpack.c.bf16 %v511, %v507
    %v532 = vpack.c.bf16 %v512, %v508
    %v533 = vpack.c.bf16 %v513, %v509
    %v534 = vpack.c.bf16 %v518, %v514
    %v535 = vpack.c.bf16 %v519, %v515
    %v536 = vpack.c.bf16 %v520, %v516
    %v537 = vpack.c.bf16 %v521, %v517
    %v538 = vld [vmem:[%s4] sm:$0xf]
    %v540 = vlaneseq
    %v541 = vshrl.u32 %v540, 7
    %v542 = vsub.s32 0, %v541
    %v543 = vrot.slane %v538, %v542
    %v544 = vlaneseq
    %v545 = vshrl.u32 %v544, 7
    %v546 = vsub.s32 1, %v545
    %v547 = vrot.slane %v538, %v546
    %v548 = vlaneseq
    %v549 = vshrl.u32 %v548, 7
    %v550 = vsub.s32 2, %v549
    %v551 = vrot.slane %v538, %v550
    %v552 = vlaneseq
    %v553 = vshrl.u32 %v552, 7
    %v554 = vsub.s32 3, %v553
    %v555 = vrot.slane %v538, %v554
    %v688 = vunpack.c.l.b16 %v62
    %v689 = vunpack.c.h.b16 %v62
    %v690 = vunpack.c.l.b16 %v63
    %v691 = vunpack.c.h.b16 %v63
    %v692 = vunpack.c.l.b16 %v64
    %v693 = vunpack.c.h.b16 %v64
    %v694 = vunpack.c.l.b16 %v65
    %v695 = vunpack.c.h.b16 %v65
    %v696 = vunpack.c.l.b16 %v66
    %v697 = vunpack.c.h.b16 %v66
    %v698 = vunpack.c.l.b16 %v67
    %v699 = vunpack.c.h.b16 %v67
    %v700 = vunpack.c.l.b16 %v68
    %v701 = vunpack.c.h.b16 %v68
    %v702 = vunpack.c.l.b16 %v69
    %v703 = vunpack.c.h.b16 %v69
    %v704 = vunpack.c.l.b16 %v70
    %v705 = vunpack.c.h.b16 %v70
    %v706 = vunpack.c.l.b16 %v71
    %v707 = vunpack.c.h.b16 %v71
    %v708 = vunpack.c.l.b16 %v72
    %v709 = vunpack.c.h.b16 %v72
    %v710 = vunpack.c.l.b16 %v73
    %v711 = vunpack.c.h.b16 %v73
    %v712 = vunpack.c.l.b16 %v74
    %v713 = vunpack.c.h.b16 %v74
    %v714 = vunpack.c.l.b16 %v75
    %v715 = vunpack.c.h.b16 %v75
    %v716 = vunpack.c.l.b16 %v76
    %v717 = vunpack.c.h.b16 %v76
    %v718 = vunpack.c.l.b16 %v77
    %v719 = vunpack.c.h.b16 %v77
    %v720 = vunpack.c.l.b16 %v78
    %v721 = vunpack.c.h.b16 %v78
    %v722 = vunpack.c.l.b16 %v79
    %v723 = vunpack.c.h.b16 %v79
    %v724 = vunpack.c.l.b16 %v80
    %v725 = vunpack.c.h.b16 %v80
    %v726 = vunpack.c.l.b16 %v81
    %v727 = vunpack.c.h.b16 %v81
    %v728 = vunpack.c.l.b16 %v82
    %v729 = vunpack.c.h.b16 %v82
    %v730 = vunpack.c.l.b16 %v83
    %v731 = vunpack.c.h.b16 %v83
    %v732 = vunpack.c.l.b16 %v84
    %v733 = vunpack.c.h.b16 %v84
    %v734 = vunpack.c.l.b16 %v85
    %v735 = vunpack.c.h.b16 %v85
    %v736 = vunpack.c.l.b16 %v86
    %v737 = vunpack.c.h.b16 %v86
    %v738 = vunpack.c.l.b16 %v87
    %v739 = vunpack.c.h.b16 %v87
    %v740 = vunpack.c.l.b16 %v88
    %v741 = vunpack.c.h.b16 %v88
    %v742 = vunpack.c.l.b16 %v89
    %v743 = vunpack.c.h.b16 %v89
    %v744 = vunpack.c.l.b16 %v90
    %v745 = vunpack.c.h.b16 %v90
    %v746 = vunpack.c.l.b16 %v91
    %v747 = vunpack.c.h.b16 %v91
    %v748 = vunpack.c.l.b16 %v92
    %v749 = vunpack.c.h.b16 %v92
    %v750 = vunpack.c.l.b16 %v93
    %v751 = vunpack.c.h.b16 %v93
    %v752 = vunpack.c.l.b16 %v94
    %v753 = vunpack.c.h.b16 %v94
    %v754 = vunpack.c.l.b16 %v95
    %v755 = vunpack.c.h.b16 %v95
    %v756 = vunpack.c.l.b16 %v96
    %v757 = vunpack.c.h.b16 %v96
    %v758 = vunpack.c.l.b16 %v97
    %v759 = vunpack.c.h.b16 %v97
    %v760 = vunpack.c.l.b16 %v98
    %v761 = vunpack.c.h.b16 %v98
    %v762 = vunpack.c.l.b16 %v99
    %v763 = vunpack.c.h.b16 %v99
    %v764 = vunpack.c.l.b16 %v100
    %v765 = vunpack.c.h.b16 %v100
    %v766 = vunpack.c.l.b16 %v101
    %v767 = vunpack.c.h.b16 %v101
    %v768 = vunpack.c.l.b16 %v102
    %v769 = vunpack.c.h.b16 %v102
    %v770 = vunpack.c.l.b16 %v103
    %v771 = vunpack.c.h.b16 %v103
    %v772 = vunpack.c.l.b16 %v104
    %v773 = vunpack.c.h.b16 %v104
    %v774 = vunpack.c.l.b16 %v105
    %v775 = vunpack.c.h.b16 %v105
    %v776 = vunpack.c.l.b16 %v106
    %v777 = vunpack.c.h.b16 %v106
    %v778 = vunpack.c.l.b16 %v107
    %v779 = vunpack.c.h.b16 %v107
    %v780 = vunpack.c.l.b16 %v108
    %v781 = vunpack.c.h.b16 %v108
    %v782 = vunpack.c.l.b16 %v109
    %v783 = vunpack.c.h.b16 %v109
    %v784 = vunpack.c.l.b16 %v110
    %v785 = vunpack.c.h.b16 %v110
    %v786 = vunpack.c.l.b16 %v111
    %v787 = vunpack.c.h.b16 %v111
    %v788 = vunpack.c.l.b16 %v112
    %v789 = vunpack.c.h.b16 %v112
    %v790 = vunpack.c.l.b16 %v113
    %v791 = vunpack.c.h.b16 %v113
    %v792 = vunpack.c.l.b16 %v114
    %v793 = vunpack.c.h.b16 %v114
    %v794 = vunpack.c.l.b16 %v115
    %v795 = vunpack.c.h.b16 %v115
    %v796 = vunpack.c.l.b16 %v116
    %v797 = vunpack.c.h.b16 %v116
    %v798 = vunpack.c.l.b16 %v117
    %v799 = vunpack.c.h.b16 %v117
    %v800 = vunpack.c.l.b16 %v118
    %v801 = vunpack.c.h.b16 %v118
    %v802 = vunpack.c.l.b16 %v119
    %v803 = vunpack.c.h.b16 %v119
    %v804 = vunpack.c.l.b16 %v120
    %v805 = vunpack.c.h.b16 %v120
    %v806 = vunpack.c.l.b16 %v121
    %v807 = vunpack.c.h.b16 %v121
    %v808 = vunpack.c.l.b16 %v122
    %v809 = vunpack.c.h.b16 %v122
    %v810 = vunpack.c.l.b16 %v123
    %v811 = vunpack.c.h.b16 %v123
    %v812 = vunpack.c.l.b16 %v124
    %v813 = vunpack.c.h.b16 %v124
    %v814 = vunpack.c.l.b16 %v125
    %v815 = vunpack.c.h.b16 %v125
    %v816 = vunpack.c.l.b16 %v126
    %v817 = vunpack.c.h.b16 %v126
    %v818 = vunpack.c.l.b16 %v127
    %v819 = vunpack.c.h.b16 %v127
    %v820 = vunpack.c.l.b16 %v128
    %v821 = vunpack.c.h.b16 %v128
    %v822 = vunpack.c.l.b16 %v129
    %v823 = vunpack.c.h.b16 %v129
    %v824 = vunpack.c.l.b16 %v130
    %v825 = vunpack.c.h.b16 %v130
    %v826 = vunpack.c.l.b16 %v131
    %v827 = vunpack.c.h.b16 %v131
    %v828 = vunpack.c.l.b16 %v132
    %v829 = vunpack.c.h.b16 %v132
    %v830 = vunpack.c.l.b16 %v133
    %v831 = vunpack.c.h.b16 %v133
    %v832 = vunpack.c.l.b16 %v134
    %v833 = vunpack.c.h.b16 %v134
    %v834 = vunpack.c.l.b16 %v135
    %v835 = vunpack.c.h.b16 %v135
    %v836 = vunpack.c.l.b16 %v136
    %v837 = vunpack.c.h.b16 %v136
    %v838 = vunpack.c.l.b16 %v137
    %v839 = vunpack.c.h.b16 %v137
    %v840 = vunpack.c.l.b16 %v138
    %v841 = vunpack.c.h.b16 %v138
    %v842 = vunpack.c.l.b16 %v139
    %v843 = vunpack.c.h.b16 %v139
    %v844 = vunpack.c.l.b16 %v140
    %v845 = vunpack.c.h.b16 %v140
    %v846 = vunpack.c.l.b16 %v141
    %v847 = vunpack.c.h.b16 %v141
    %v848 = vunpack.c.l.b16 %v142
    %v849 = vunpack.c.h.b16 %v142
    %v850 = vunpack.c.l.b16 %v143
    %v851 = vunpack.c.h.b16 %v143
    %v852 = vunpack.c.l.b16 %v144
    %v853 = vunpack.c.h.b16 %v144
    %v854 = vunpack.c.l.b16 %v145
    %v855 = vunpack.c.h.b16 %v145
    %v856 = vunpack.c.l.b16 %v146
    %v857 = vunpack.c.h.b16 %v146
    %v858 = vunpack.c.l.b16 %v147
    %v859 = vunpack.c.h.b16 %v147
    %v860 = vunpack.c.l.b16 %v148
    %v861 = vunpack.c.h.b16 %v148
    %v862 = vunpack.c.l.b16 %v149
    %v863 = vunpack.c.h.b16 %v149
    %v864 = vunpack.c.l.b16 %v150
    %v865 = vunpack.c.h.b16 %v150
    %v866 = vunpack.c.l.b16 %v151
    %v867 = vunpack.c.h.b16 %v151
    %v868 = vunpack.c.l.b16 %v152
    %v869 = vunpack.c.h.b16 %v152
    %v870 = vunpack.c.l.b16 %v153
    %v871 = vunpack.c.h.b16 %v153
    %v872 = vunpack.c.l.b16 %v154
    %v873 = vunpack.c.h.b16 %v154
    %v874 = vunpack.c.l.b16 %v155
    %v875 = vunpack.c.h.b16 %v155
    %v876 = vunpack.c.l.b16 %v156
    %v877 = vunpack.c.h.b16 %v156
    %v878 = vunpack.c.l.b16 %v157
    %v879 = vunpack.c.h.b16 %v157
    %v880 = vunpack.c.l.b16 %v158
    %v881 = vunpack.c.h.b16 %v158
    %v882 = vunpack.c.l.b16 %v159
    %v883 = vunpack.c.h.b16 %v159
    %v884 = vunpack.c.l.b16 %v160
    %v885 = vunpack.c.h.b16 %v160
    %v886 = vunpack.c.l.b16 %v161
    %v887 = vunpack.c.h.b16 %v161
    %v888 = vunpack.c.l.b16 %v162
    %v889 = vunpack.c.h.b16 %v162
    %v890 = vunpack.c.l.b16 %v163
    %v891 = vunpack.c.h.b16 %v163
    %v892 = vunpack.c.l.b16 %v164
    %v893 = vunpack.c.h.b16 %v164
    %v894 = vunpack.c.l.b16 %v165
    %v895 = vunpack.c.h.b16 %v165
    %v896 = vunpack.c.l.b16 %v166
    %v897 = vunpack.c.h.b16 %v166
    %v898 = vunpack.c.l.b16 %v167
    %v899 = vunpack.c.h.b16 %v167
    %v900 = vunpack.c.l.b16 %v168
    %v901 = vunpack.c.h.b16 %v168
    %v902 = vunpack.c.l.b16 %v169
    %v903 = vunpack.c.h.b16 %v169
    %v904 = vunpack.c.l.b16 %v170
    %v905 = vunpack.c.h.b16 %v170
    %v906 = vunpack.c.l.b16 %v171
    %v907 = vunpack.c.h.b16 %v171
    %v908 = vunpack.c.l.b16 %v172
    %v909 = vunpack.c.h.b16 %v172
    %v910 = vunpack.c.l.b16 %v173
    %v911 = vunpack.c.h.b16 %v173
    %v912 = vunpack.c.l.b16 %v174
    %v913 = vunpack.c.h.b16 %v174
    %v914 = vunpack.c.l.b16 %v175
    %v915 = vunpack.c.h.b16 %v175
    %v916 = vunpack.c.l.b16 %v176
    %v917 = vunpack.c.h.b16 %v176
    %v918 = vunpack.c.l.b16 %v177
    %v919 = vunpack.c.h.b16 %v177
    %v920 = vunpack.c.l.b16 %v178
    %v921 = vunpack.c.h.b16 %v178
    %v922 = vunpack.c.l.b16 %v179
    %v923 = vunpack.c.h.b16 %v179
    %v924 = vunpack.c.l.b16 %v180
    %v925 = vunpack.c.h.b16 %v180
    %v926 = vunpack.c.l.b16 %v181
    %v927 = vunpack.c.h.b16 %v181
    %v928 = vunpack.c.l.b16 %v182
    %v929 = vunpack.c.h.b16 %v182
    %v930 = vunpack.c.l.b16 %v183
    %v931 = vunpack.c.h.b16 %v183
    %v932 = vunpack.c.l.b16 %v184
    %v933 = vunpack.c.h.b16 %v184
    %v934 = vunpack.c.l.b16 %v185
    %v935 = vunpack.c.h.b16 %v185
    %v936 = vunpack.c.l.b16 %v186
    %v937 = vunpack.c.h.b16 %v186
    %v938 = vunpack.c.l.b16 %v187
    %v939 = vunpack.c.h.b16 %v187
    %v940 = vunpack.c.l.b16 %v188
    %v941 = vunpack.c.h.b16 %v188
    %v942 = vunpack.c.l.b16 %v189
    %v943 = vunpack.c.h.b16 %v189
    %v944 = vpack.c.b16 %v692, %v688
    %v945 = vpack.c.b16 %v693, %v689
    %v946 = vpack.c.b16 %v694, %v690
    %v947 = vpack.c.b16 %v695, %v691
    %v948 = vpack.c.b16 %v700, %v696
    %v949 = vpack.c.b16 %v701, %v697
    %v950 = vpack.c.b16 %v702, %v698
    %v951 = vpack.c.b16 %v703, %v699
    %v952 = vpack.c.b16 %v708, %v704
    %v953 = vpack.c.b16 %v709, %v705
    %v954 = vpack.c.b16 %v710, %v706
    %v955 = vpack.c.b16 %v711, %v707
    %v956 = vpack.c.b16 %v716, %v712
    %v957 = vpack.c.b16 %v717, %v713
    %v958 = vpack.c.b16 %v718, %v714
    %v959 = vpack.c.b16 %v719, %v715
    %v960 = vpack.c.b16 %v724, %v720
    %v961 = vpack.c.b16 %v725, %v721
    %v962 = vpack.c.b16 %v726, %v722
    %v963 = vpack.c.b16 %v727, %v723
    %v964 = vpack.c.b16 %v732, %v728
    %v965 = vpack.c.b16 %v733, %v729
    %v966 = vpack.c.b16 %v734, %v730
    %v967 = vpack.c.b16 %v735, %v731
    %v968 = vpack.c.b16 %v740, %v736
    %v969 = vpack.c.b16 %v741, %v737
    %v970 = vpack.c.b16 %v742, %v738
    %v971 = vpack.c.b16 %v743, %v739
    %v972 = vpack.c.b16 %v748, %v744
    %v973 = vpack.c.b16 %v749, %v745
    %v974 = vpack.c.b16 %v750, %v746
    %v975 = vpack.c.b16 %v751, %v747
    %v976 = vpack.c.b16 %v756, %v752
    %v977 = vpack.c.b16 %v757, %v753
    %v978 = vpack.c.b16 %v758, %v754
    %v979 = vpack.c.b16 %v759, %v755
    %v980 = vpack.c.b16 %v764, %v760
    %v981 = vpack.c.b16 %v765, %v761
    %v982 = vpack.c.b16 %v766, %v762
    %v983 = vpack.c.b16 %v767, %v763
    %v984 = vpack.c.b16 %v772, %v768
    %v985 = vpack.c.b16 %v773, %v769
    %v986 = vpack.c.b16 %v774, %v770
    %v987 = vpack.c.b16 %v775, %v771
    %v988 = vpack.c.b16 %v780, %v776
    %v989 = vpack.c.b16 %v781, %v777
    %v990 = vpack.c.b16 %v782, %v778
    %v991 = vpack.c.b16 %v783, %v779
    %v992 = vpack.c.b16 %v788, %v784
    %v993 = vpack.c.b16 %v789, %v785
    %v994 = vpack.c.b16 %v790, %v786
    %v995 = vpack.c.b16 %v791, %v787
    %v996 = vpack.c.b16 %v796, %v792
    %v997 = vpack.c.b16 %v797, %v793
    %v998 = vpack.c.b16 %v798, %v794
    %v999 = vpack.c.b16 %v799, %v795
    %v1000 = vpack.c.b16 %v804, %v800
    %v1001 = vpack.c.b16 %v805, %v801
    %v1002 = vpack.c.b16 %v806, %v802
    %v1003 = vpack.c.b16 %v807, %v803
    %v1004 = vpack.c.b16 %v812, %v808
    %v1005 = vpack.c.b16 %v813, %v809
    %v1006 = vpack.c.b16 %v814, %v810
    %v1007 = vpack.c.b16 %v815, %v811
    %v1008 = vpack.c.b16 %v820, %v816
    %v1009 = vpack.c.b16 %v821, %v817
    %v1010 = vpack.c.b16 %v822, %v818
    %v1011 = vpack.c.b16 %v823, %v819
    %v1012 = vpack.c.b16 %v828, %v824
    %v1013 = vpack.c.b16 %v829, %v825
    %v1014 = vpack.c.b16 %v830, %v826
    %v1015 = vpack.c.b16 %v831, %v827
    %v1016 = vpack.c.b16 %v836, %v832
    %v1017 = vpack.c.b16 %v837, %v833
    %v1018 = vpack.c.b16 %v838, %v834
    %v1019 = vpack.c.b16 %v839, %v835
    %v1020 = vpack.c.b16 %v844, %v840
    %v1021 = vpack.c.b16 %v845, %v841
    %v1022 = vpack.c.b16 %v846, %v842
    %v1023 = vpack.c.b16 %v847, %v843
    %v1024 = vpack.c.b16 %v852, %v848
    %v1025 = vpack.c.b16 %v853, %v849
    %v1026 = vpack.c.b16 %v854, %v850
    %v1027 = vpack.c.b16 %v855, %v851
    %v1028 = vpack.c.b16 %v860, %v856
    %v1029 = vpack.c.b16 %v861, %v857
    %v1030 = vpack.c.b16 %v862, %v858
    %v1031 = vpack.c.b16 %v863, %v859
    %v1032 = vpack.c.b16 %v868, %v864
    %v1033 = vpack.c.b16 %v869, %v865
    %v1034 = vpack.c.b16 %v870, %v866
    %v1035 = vpack.c.b16 %v871, %v867
    %v1036 = vpack.c.b16 %v876, %v872
    %v1037 = vpack.c.b16 %v877, %v873
    %v1038 = vpack.c.b16 %v878, %v874
    %v1039 = vpack.c.b16 %v879, %v875
    %v1040 = vpack.c.b16 %v884, %v880
    %v1041 = vpack.c.b16 %v885, %v881
    %v1042 = vpack.c.b16 %v886, %v882
    %v1043 = vpack.c.b16 %v887, %v883
    %v1044 = vpack.c.b16 %v892, %v888
    %v1045 = vpack.c.b16 %v893, %v889
    %v1046 = vpack.c.b16 %v894, %v890
    %v1047 = vpack.c.b16 %v895, %v891
    %v1048 = vpack.c.b16 %v900, %v896
    %v1049 = vpack.c.b16 %v901, %v897
    %v1050 = vpack.c.b16 %v902, %v898
    %v1051 = vpack.c.b16 %v903, %v899
    %v1052 = vpack.c.b16 %v908, %v904
    %v1053 = vpack.c.b16 %v909, %v905
    %v1054 = vpack.c.b16 %v910, %v906
    %v1055 = vpack.c.b16 %v911, %v907
    %v1056 = vpack.c.b16 %v916, %v912
    %v1057 = vpack.c.b16 %v917, %v913
    %v1058 = vpack.c.b16 %v918, %v914
    %v1059 = vpack.c.b16 %v919, %v915
    %v1060 = vpack.c.b16 %v924, %v920
    %v1061 = vpack.c.b16 %v925, %v921
    %v1062 = vpack.c.b16 %v926, %v922
    %v1063 = vpack.c.b16 %v927, %v923
    %v1064 = vpack.c.b16 %v932, %v928
    %v1065 = vpack.c.b16 %v933, %v929
    %v1066 = vpack.c.b16 %v934, %v930
    %v1067 = vpack.c.b16 %v935, %v931
    %v1068 = vpack.c.b16 %v940, %v936
    %v1069 = vpack.c.b16 %v941, %v937
    %v1070 = vpack.c.b16 %v942, %v938
    %v1071 = vpack.c.b16 %v943, %v939
    %1200 = vmatprep.subr.bf16.mxu0 %v973
    %1201 = vmatpush1.bf16.msra.mxu0 %v972
    %1202 = vmatprep.subr.bf16.mxu0 %v969
    %1203 = vmatpush1.bf16.msra.mxu0 %v968
    %1204 = vmatprep.subr.bf16.mxu0 %v965
    %1205 = vmatpush1.bf16.msra.mxu0 %v964
    %1206 = vmatprep.subr.bf16.mxu0 %v961
    %1207 = vmatpush1.bf16.msra.mxu0 %v960
    %1208 = vmatprep.subr.bf16.mxu0 %v957
    %1209 = vmatpush1.bf16.msra.mxu0 %v956
    %1210 = vmatprep.subr.bf16.mxu0 %v953
    %1211 = vmatpush1.bf16.msra.mxu0 %v952
    %1212 = vmatprep.subr.bf16.mxu0 %v949
    %1213 = vmatpush1.bf16.msra.mxu0 %v948
    %1214 = vmatprep.subr.bf16.mxu0 %v945
    %1215 = vmatpush1.bf16.msra.mxu0 %v944
    %1216 = vmatprep.subr.bf16.mxu0 %v1005
    %1217 = vmatpush2.bf16.msra.mxu0 %v1004
    %1218 = vmatprep.subr.bf16.mxu0 %v1001
    %1219 = vmatpush2.bf16.msra.mxu0 %v1000
    %1220 = vmatprep.subr.bf16.mxu0 %v997
    %1221 = vmatpush2.bf16.msra.mxu0 %v996
    %1222 = vmatprep.subr.bf16.mxu0 %v993
    %1223 = vmatpush2.bf16.msra.mxu0 %v992
    %1224 = vmatprep.subr.bf16.mxu0 %v989
    %1225 = vmatpush2.bf16.msra.mxu0 %v988
    %1226 = vmatprep.subr.bf16.mxu0 %v985
    %1227 = vmatpush2.bf16.msra.mxu0 %v984
    %1228 = vmatprep.subr.bf16.mxu0 %v981
    %1229 = vmatpush2.bf16.msra.mxu0 %v980
    %1230 = vmatprep.subr.bf16.mxu0 %v977
    %1231 = vmatpush2.bf16.msra.mxu0 %v976
    %1232 = vmatprep.mubr.bf16.mxu0 %v523
    %1233 = vmatmul.mubr.bf16.gmra.mxu0 %v522
    %v1234 = vpop.f32.mrf.mxu0
    %v1235 = vadd.f32 %v543, %v1234
    %v1236 = vpop.f32.mrf.mxu0
    %v1237 = vadd.f32 %v547, %v1236
    %v1238 = vpop.f32.mrf.mxu0
    %v1239 = vadd.f32 %v543, %v1238
    %v1240 = vpop.f32.mrf.mxu0
    %v1241 = vadd.f32 %v547, %v1240
    %1242 = vmatprep.mubr.bf16.mxu0 %v527
    %1243 = vmatmul.mubr.bf16.gmra.mxu0 %v526
    %v1244 = vpop.f32.mrf.mxu0
    %v1245 = vadd.f32 %v543, %v1244
    %v1246 = vpop.f32.mrf.mxu0
    %v1247 = vadd.f32 %v547, %v1246
    %v1248 = vpop.f32.mrf.mxu0
    %v1249 = vadd.f32 %v543, %v1248
    %v1250 = vpop.f32.mrf.mxu0
    %v1251 = vadd.f32 %v547, %v1250
    %1252 = vmatprep.mubr.bf16.mxu0 %v531
    %1253 = vmatmul.mubr.bf16.gmra.mxu0 %v530
    %v1254 = vpop.f32.mrf.mxu0
    %v1255 = vadd.f32 %v543, %v1254
    %v1256 = vpop.f32.mrf.mxu0
    %v1257 = vadd.f32 %v547, %v1256
    %v1258 = vpop.f32.mrf.mxu0
    %v1259 = vadd.f32 %v543, %v1258
    %v1260 = vpop.f32.mrf.mxu0
    %v1261 = vadd.f32 %v547, %v1260
    %1262 = vmatprep.mubr.bf16.mxu0 %v535
    %1263 = vmatmul.mubr.bf16.gmra.mxu0 %v534
    %v1264 = vpop.f32.mrf.mxu0
    %v1265 = vadd.f32 %v543, %v1264
    %v1266 = vpop.f32.mrf.mxu0
    %v1267 = vadd.f32 %v547, %v1266
    %v1268 = vpop.f32.mrf.mxu0
    %v1269 = vadd.f32 %v543, %v1268
    %v1270 = vpop.f32.mrf.mxu0
    %v1271 = vadd.f32 %v547, %v1270
    %1272 = vdwg.mxu0
    %1273 = vmatprep.subr.bf16.mxu0 %v1037
    %1274 = vmatpush1.bf16.msra.mxu0 %v1036
    %1275 = vmatprep.subr.bf16.mxu0 %v1033
    %1276 = vmatpush1.bf16.msra.mxu0 %v1032
    %1277 = vmatprep.subr.bf16.mxu0 %v1029
    %1278 = vmatpush1.bf16.msra.mxu0 %v1028
    %1279 = vmatprep.subr.bf16.mxu0 %v1025
    %1280 = vmatpush1.bf16.msra.mxu0 %v1024
    %1281 = vmatprep.subr.bf16.mxu0 %v1021
    %1282 = vmatpush1.bf16.msra.mxu0 %v1020
    %1283 = vmatprep.subr.bf16.mxu0 %v1017
    %1284 = vmatpush1.bf16.msra.mxu0 %v1016
    %1285 = vmatprep.subr.bf16.mxu0 %v1013
    %1286 = vmatpush1.bf16.msra.mxu0 %v1012
    %1287 = vmatprep.subr.bf16.mxu0 %v1009
    %1288 = vmatpush1.bf16.msra.mxu0 %v1008
    %1289 = vmatprep.subr.bf16.mxu0 %v1069
    %1290 = vmatpush2.bf16.msra.mxu0 %v1068
    %1291 = vmatprep.subr.bf16.mxu0 %v1065
    %1292 = vmatpush2.bf16.msra.mxu0 %v1064
    %1293 = vmatprep.subr.bf16.mxu0 %v1061
    %1294 = vmatpush2.bf16.msra.mxu0 %v1060
    %1295 = vmatprep.subr.bf16.mxu0 %v1057
    %1296 = vmatpush2.bf16.msra.mxu0 %v1056
    %1297 = vmatprep.subr.bf16.mxu0 %v1053
    %1298 = vmatpush2.bf16.msra.mxu0 %v1052
    %1299 = vmatprep.subr.bf16.mxu0 %v1049
    %1300 = vmatpush2.bf16.msra.mxu0 %v1048
    %1301 = vmatprep.subr.bf16.mxu0 %v1045
    %1302 = vmatpush2.bf16.msra.mxu0 %v1044
    %1303 = vmatprep.subr.bf16.mxu0 %v1041
    %1304 = vmatpush2.bf16.msra.mxu0 %v1040
    %1305 = vmatprep.mubr.bf16.mxu0 %v525
    %1306 = vmatmul.mubr.bf16.gmra.mxu0 %v524
    %v1307 = vpop.f32.mrf.mxu0
    %v1308 = vadd.f32 %v1235, %v1307
    %v1309 = vpop.f32.mrf.mxu0
    %v1310 = vadd.f32 %v1237, %v1309
    %v1311 = vpop.f32.mrf.mxu0
    %v1312 = vadd.f32 %v1239, %v1311
    %v1313 = vpop.f32.mrf.mxu0
    %v1314 = vadd.f32 %v1241, %v1313
    %1315 = vmatprep.mubr.bf16.mxu0 %v529
    %1316 = vmatmul.mubr.bf16.gmra.mxu0 %v528
    %v1317 = vpop.f32.mrf.mxu0
    %v1318 = vadd.f32 %v1245, %v1317
    %v1319 = vpop.f32.mrf.mxu0
    %v1320 = vadd.f32 %v1247, %v1319
    %v1321 = vpop.f32.mrf.mxu0
    %v1322 = vadd.f32 %v1249, %v1321
    %v1323 = vpop.f32.mrf.mxu0
    %v1324 = vadd.f32 %v1251, %v1323
    %1325 = vmatprep.mubr.bf16.mxu0 %v533
    %1326 = vmatmul.mubr.bf16.gmra.mxu0 %v532
    %v1327 = vpop.f32.mrf.mxu0
    %v1328 = vadd.f32 %v1255, %v1327
    %v1329 = vpop.f32.mrf.mxu0
    %v1330 = vadd.f32 %v1257, %v1329
    %v1331 = vpop.f32.mrf.mxu0
    %v1332 = vadd.f32 %v1259, %v1331
    %v1333 = vpop.f32.mrf.mxu0
    %v1334 = vadd.f32 %v1261, %v1333
    %1335 = vmatprep.mubr.bf16.mxu0 %v537
    %1336 = vmatmul.mubr.bf16.gmra.mxu0 %v536
    %v1337 = vpop.f32.mrf.mxu0
    %v1338 = vadd.f32 %v1265, %v1337
    %v1339 = vpop.f32.mrf.mxu0
    %v1340 = vadd.f32 %v1267, %v1339
    %v1341 = vpop.f32.mrf.mxu0
    %v1342 = vadd.f32 %v1269, %v1341
    %v1343 = vpop.f32.mrf.mxu0
    %v1344 = vadd.f32 %v1271, %v1343
    %1345 = vdwg.mxu0
    %1346 = vmatprep.subr.bf16.mxu0 %v975
    %1347 = vmatpush1.bf16.msra.mxu0 %v974
    %1348 = vmatprep.subr.bf16.mxu0 %v971
    %1349 = vmatpush1.bf16.msra.mxu0 %v970
    %1350 = vmatprep.subr.bf16.mxu0 %v967
    %1351 = vmatpush1.bf16.msra.mxu0 %v966
    %1352 = vmatprep.subr.bf16.mxu0 %v963
    %1353 = vmatpush1.bf16.msra.mxu0 %v962
    %1354 = vmatprep.subr.bf16.mxu0 %v959
    %1355 = vmatpush1.bf16.msra.mxu0 %v958
    %1356 = vmatprep.subr.bf16.mxu0 %v955
    %1357 = vmatpush1.bf16.msra.mxu0 %v954
    %1358 = vmatprep.subr.bf16.mxu0 %v951
    %1359 = vmatpush1.bf16.msra.mxu0 %v950
    %1360 = vmatprep.subr.bf16.mxu0 %v947
    %1361 = vmatpush1.bf16.msra.mxu0 %v946
    %1362 = vmatprep.subr.bf16.mxu0 %v1007
    %1363 = vmatpush2.bf16.msra.mxu0 %v1006
    %1364 = vmatprep.subr.bf16.mxu0 %v1003
    %1365 = vmatpush2.bf16.msra.mxu0 %v1002
    %1366 = vmatprep.subr.bf16.mxu0 %v999
    %1367 = vmatpush2.bf16.msra.mxu0 %v998
    %1368 = vmatprep.subr.bf16.mxu0 %v995
    %1369 = vmatpush2.bf16.msra.mxu0 %v994
    %1370 = vmatprep.subr.bf16.mxu0 %v991
    %1371 = vmatpush2.bf16.msra.mxu0 %v990
    %1372 = vmatprep.subr.bf16.mxu0 %v987
    %1373 = vmatpush2.bf16.msra.mxu0 %v986
    %1374 = vmatprep.subr.bf16.mxu0 %v983
    %1375 = vmatpush2.bf16.msra.mxu0 %v982
    %1376 = vmatprep.subr.bf16.mxu0 %v979
    %1377 = vmatpush2.bf16.msra.mxu0 %v978
    %1378 = vmatprep.mubr.bf16.mxu0 %v523
    %1379 = vmatmul.mubr.bf16.gmra.mxu0 %v522
    %v1380 = vpop.f32.mrf.mxu0
    %v1381 = vadd.f32 %v551, %v1380
    %v1382 = vpop.f32.mrf.mxu0
    %v1383 = vadd.f32 %v555, %v1382
    %v1384 = vpop.f32.mrf.mxu0
    %v1385 = vadd.f32 %v551, %v1384
    %v1386 = vpop.f32.mrf.mxu0
    %v1387 = vadd.f32 %v555, %v1386
    %1388 = vmatprep.mubr.bf16.mxu0 %v527
    %1389 = vmatmul.mubr.bf16.gmra.mxu0 %v526
    %v1390 = vpop.f32.mrf.mxu0
    %v1391 = vadd.f32 %v551, %v1390
    %v1392 = vpop.f32.mrf.mxu0
    %v1393 = vadd.f32 %v555, %v1392
    %v1394 = vpop.f32.mrf.mxu0
    %v1395 = vadd.f32 %v551, %v1394
    %v1396 = vpop.f32.mrf.mxu0
    %v1397 = vadd.f32 %v555, %v1396
    %1398 = vmatprep.mubr.bf16.mxu0 %v531
    %1399 = vmatmul.mubr.bf16.gmra.mxu0 %v530
    %v1400 = vpop.f32.mrf.mxu0
    %v1401 = vadd.f32 %v551, %v1400
    %v1402 = vpop.f32.mrf.mxu0
    %v1403 = vadd.f32 %v555, %v1402
    %v1404 = vpop.f32.mrf.mxu0
    %v1405 = vadd.f32 %v551, %v1404
    %v1406 = vpop.f32.mrf.mxu0
    %v1407 = vadd.f32 %v555, %v1406
    %1408 = vmatprep.mubr.bf16.mxu0 %v535
    %1409 = vmatmul.mubr.bf16.gmra.mxu0 %v534
    %v1410 = vpop.f32.mrf.mxu0
    %v1411 = vadd.f32 %v551, %v1410
    %v1412 = vpop.f32.mrf.mxu0
    %v1413 = vadd.f32 %v555, %v1412
    %v1414 = vpop.f32.mrf.mxu0
    %v1415 = vadd.f32 %v551, %v1414
    %v1416 = vpop.f32.mrf.mxu0
    %v1417 = vadd.f32 %v555, %v1416
    %1418 = vdwg.mxu0
    %1419 = vmatprep.subr.bf16.mxu0 %v1039
    %1420 = vmatpush1.bf16.msra.mxu0 %v1038
    %1421 = vmatprep.subr.bf16.mxu0 %v1035
    %1422 = vmatpush1.bf16.msra.mxu0 %v1034
    %1423 = vmatprep.subr.bf16.mxu0 %v1031
    %1424 = vmatpush1.bf16.msra.mxu0 %v1030
    %1425 = vmatprep.subr.bf16.mxu0 %v1027
    %1426 = vmatpush1.bf16.msra.mxu0 %v1026
    %1427 = vmatprep.subr.bf16.mxu0 %v1023
    %1428 = vmatpush1.bf16.msra.mxu0 %v1022
    %1429 = vmatprep.subr.bf16.mxu0 %v1019
    %1430 = vmatpush1.bf16.msra.mxu0 %v1018
    %1431 = vmatprep.subr.bf16.mxu0 %v1015
    %1432 = vmatpush1.bf16.msra.mxu0 %v1014
    %1433 = vmatprep.subr.bf16.mxu0 %v1011
    %1434 = vmatpush1.bf16.msra.mxu0 %v1010
    %1435 = vmatprep.subr.bf16.mxu0 %v1071
    %1436 = vmatpush2.bf16.msra.mxu0 %v1070
    %1437 = vmatprep.subr.bf16.mxu0 %v1067
    %1438 = vmatpush2.bf16.msra.mxu0 %v1066
    %1439 = vmatprep.subr.bf16.mxu0 %v1063
    %1440 = vmatpush2.bf16.msra.mxu0 %v1062
    %1441 = vmatprep.subr.bf16.mxu0 %v1059
    %1442 = vmatpush2.bf16.msra.mxu0 %v1058
    %1443 = vmatprep.subr.bf16.mxu0 %v1055
    %1444 = vmatpush2.bf16.msra.mxu0 %v1054
    %1445 = vmatprep.subr.bf16.mxu0 %v1051
    %1446 = vmatpush2.bf16.msra.mxu0 %v1050
    %1447 = vmatprep.subr.bf16.mxu0 %v1047
    %1448 = vmatpush2.bf16.msra.mxu0 %v1046
    %1449 = vmatprep.subr.bf16.mxu0 %v1043
    %1450 = vmatpush2.bf16.msra.mxu0 %v1042
    %1451 = vmatprep.mubr.bf16.mxu0 %v525
    %1452 = vmatmul.mubr.bf16.gmra.mxu0 %v524
    %v1453 = vpop.f32.mrf.mxu0
    %v1454 = vadd.f32 %v1381, %v1453
    %v1455 = vpop.f32.mrf.mxu0
    %v1456 = vadd.f32 %v1383, %v1455
    %v1457 = vpop.f32.mrf.mxu0
    %v1458 = vadd.f32 %v1385, %v1457
    %v1459 = vpop.f32.mrf.mxu0
    %v1460 = vadd.f32 %v1387, %v1459
    %1461 = vmatprep.mubr.bf16.mxu0 %v529
    %1462 = vmatmul.mubr.bf16.gmra.mxu0 %v528
    %v1463 = vpop.f32.mrf.mxu0
    %v1464 = vadd.f32 %v1391, %v1463
    %v1465 = vpop.f32.mrf.mxu0
    %v1466 = vadd.f32 %v1393, %v1465
    %v1467 = vpop.f32.mrf.mxu0
    %v1468 = vadd.f32 %v1395, %v1467
    %v1469 = vpop.f32.mrf.mxu0
    %v1470 = vadd.f32 %v1397, %v1469
    %1471 = vmatprep.mubr.bf16.mxu0 %v533
    %1472 = vmatmul.mubr.bf16.gmra.mxu0 %v532
    %v1473 = vpop.f32.mrf.mxu0
    %v1474 = vadd.f32 %v1401, %v1473
    %v1475 = vpop.f32.mrf.mxu0
    %v1476 = vadd.f32 %v1403, %v1475
    %v1477 = vpop.f32.mrf.mxu0
    %v1478 = vadd.f32 %v1405, %v1477
    %v1479 = vpop.f32.mrf.mxu0
    %v1480 = vadd.f32 %v1407, %v1479
    %1481 = vmatprep.mubr.bf16.mxu0 %v537
    %1482 = vmatmul.mubr.bf16.gmra.mxu0 %v536
    %v1483 = vpop.f32.mrf.mxu0
    %v1484 = vadd.f32 %v1411, %v1483
    %v1485 = vpop.f32.mrf.mxu0
    %v1486 = vadd.f32 %v1413, %v1485
    %v1487 = vpop.f32.mrf.mxu0
    %v1488 = vadd.f32 %v1415, %v1487
    %v1489 = vpop.f32.mrf.mxu0
    %v1490 = vadd.f32 %v1417, %v1489
    %1491 = vdwg.mxu0
    %v1492 = vmax.f32 %v1308, 0.0
    %v1493 = vmax.f32 %v1310, 0.0
    %v1494 = vmax.f32 %v1454, 0.0
    %v1495 = vmax.f32 %v1456, 0.0
    %v1496 = vmax.f32 %v1312, 0.0
    %v1497 = vmax.f32 %v1314, 0.0
    %v1498 = vmax.f32 %v1458, 0.0
    %v1499 = vmax.f32 %v1460, 0.0
    %v1500 = vmax.f32 %v1318, 0.0
    %v1501 = vmax.f32 %v1320, 0.0
    %v1502 = vmax.f32 %v1464, 0.0
    %v1503 = vmax.f32 %v1466, 0.0
    %v1504 = vmax.f32 %v1322, 0.0
    %v1505 = vmax.f32 %v1324, 0.0
    %v1506 = vmax.f32 %v1468, 0.0
    %v1507 = vmax.f32 %v1470, 0.0
    %v1508 = vmax.f32 %v1328, 0.0
    %v1509 = vmax.f32 %v1330, 0.0
    %v1510 = vmax.f32 %v1474, 0.0
    %v1511 = vmax.f32 %v1476, 0.0
    %v1512 = vmax.f32 %v1332, 0.0
    %v1513 = vmax.f32 %v1334, 0.0
    %v1514 = vmax.f32 %v1478, 0.0
    %v1515 = vmax.f32 %v1480, 0.0
    %v1516 = vmax.f32 %v1338, 0.0
    %v1517 = vmax.f32 %v1340, 0.0
    %v1518 = vmax.f32 %v1484, 0.0
    %v1519 = vmax.f32 %v1486, 0.0
    %v1520 = vmax.f32 %v1342, 0.0
    %v1521 = vmax.f32 %v1344, 0.0
    %v1522 = vmax.f32 %v1488, 0.0
    %v1523 = vmax.f32 %v1490, 0.0
    %v1524 = vpack.c.bf16 %v1496, %v1492
    %v1525 = vpack.c.bf16 %v1497, %v1493
    %v1526 = vpack.c.bf16 %v1498, %v1494
    %v1527 = vpack.c.bf16 %v1499, %v1495
    %v1528 = vpack.c.bf16 %v1504, %v1500
    %v1529 = vpack.c.bf16 %v1505, %v1501
    %v1530 = vpack.c.bf16 %v1506, %v1502
    %v1531 = vpack.c.bf16 %v1507, %v1503
    %v1532 = vpack.c.bf16 %v1512, %v1508
    %v1533 = vpack.c.bf16 %v1513, %v1509
    %v1534 = vpack.c.bf16 %v1514, %v1510
    %v1535 = vpack.c.bf16 %v1515, %v1511
    %v1536 = vpack.c.bf16 %v1520, %v1516
    %v1537 = vpack.c.bf16 %v1521, %v1517
    %v1538 = vpack.c.bf16 %v1522, %v1518
    %v1539 = vpack.c.bf16 %v1523, %v1519
    %v1540 = vld [vmem:[%s6] sm:$0x1]
    %v1542 = vlaneseq
    %v1543 = vshrl.u32 %v1542, 7
    %v1544 = vsub.s32 0, %v1543
    %v1545 = vrot.slane %v1540, %v1544
    %v1611 = vunpack.c.l.b16 %v190
    %v1612 = vunpack.c.l.b16 %v191
    %v1613 = vunpack.c.l.b16 %v192
    %v1614 = vunpack.c.l.b16 %v193
    %v1615 = vunpack.c.l.b16 %v194
    %v1616 = vunpack.c.l.b16 %v195
    %v1617 = vunpack.c.l.b16 %v196
    %v1618 = vunpack.c.l.b16 %v197
    %v1619 = vunpack.c.l.b16 %v198
    %v1620 = vunpack.c.l.b16 %v199
    %v1621 = vunpack.c.l.b16 %v200
    %v1622 = vunpack.c.l.b16 %v201
    %v1623 = vunpack.c.l.b16 %v202
    %v1624 = vunpack.c.l.b16 %v203
    %v1625 = vunpack.c.l.b16 %v204
    %v1626 = vunpack.c.l.b16 %v205
    %v1627 = vunpack.c.l.b16 %v206
    %v1628 = vunpack.c.l.b16 %v207
    %v1629 = vunpack.c.l.b16 %v208
    %v1630 = vunpack.c.l.b16 %v209
    %v1631 = vunpack.c.l.b16 %v210
    %v1632 = vunpack.c.l.b16 %v211
    %v1633 = vunpack.c.l.b16 %v212
    %v1634 = vunpack.c.l.b16 %v213
    %v1635 = vunpack.c.l.b16 %v214
    %v1636 = vunpack.c.l.b16 %v215
    %v1637 = vunpack.c.l.b16 %v216
    %v1638 = vunpack.c.l.b16 %v217
    %v1639 = vunpack.c.l.b16 %v218
    %v1640 = vunpack.c.l.b16 %v219
    %v1641 = vunpack.c.l.b16 %v220
    %v1642 = vunpack.c.l.b16 %v221
    %v1643 = vunpack.c.l.b16 %v222
    %v1644 = vunpack.c.l.b16 %v223
    %v1645 = vunpack.c.l.b16 %v224
    %v1646 = vunpack.c.l.b16 %v225
    %v1647 = vunpack.c.l.b16 %v226
    %v1648 = vunpack.c.l.b16 %v227
    %v1649 = vunpack.c.l.b16 %v228
    %v1650 = vunpack.c.l.b16 %v229
    %v1651 = vunpack.c.l.b16 %v230
    %v1652 = vunpack.c.l.b16 %v231
    %v1653 = vunpack.c.l.b16 %v232
    %v1654 = vunpack.c.l.b16 %v233
    %v1655 = vunpack.c.l.b16 %v234
    %v1656 = vunpack.c.l.b16 %v235
    %v1657 = vunpack.c.l.b16 %v236
    %v1658 = vunpack.c.l.b16 %v237
    %v1659 = vunpack.c.l.b16 %v238
    %v1660 = vunpack.c.l.b16 %v239
    %v1661 = vunpack.c.l.b16 %v240
    %v1662 = vunpack.c.l.b16 %v241
    %v1663 = vunpack.c.l.b16 %v242
    %v1664 = vunpack.c.l.b16 %v243
    %v1665 = vunpack.c.l.b16 %v244
    %v1666 = vunpack.c.l.b16 %v245
    %v1667 = vunpack.c.l.b16 %v246
    %v1668 = vunpack.c.l.b16 %v247
    %v1669 = vunpack.c.l.b16 %v248
    %v1670 = vunpack.c.l.b16 %v249
    %v1671 = vunpack.c.l.b16 %v250
    %v1672 = vunpack.c.l.b16 %v251
    %v1673 = vunpack.c.l.b16 %v252
    %v1674 = vunpack.c.l.b16 %v253
    %v1675 = vpack.c.b16 %v1612, %v1611
    %v1676 = vpack.c.b16 %v1614, %v1613
    %v1677 = vpack.c.b16 %v1616, %v1615
    %v1678 = vpack.c.b16 %v1618, %v1617
    %v1679 = vpack.c.b16 %v1620, %v1619
    %v1680 = vpack.c.b16 %v1622, %v1621
    %v1681 = vpack.c.b16 %v1624, %v1623
    %v1682 = vpack.c.b16 %v1626, %v1625
    %v1683 = vpack.c.b16 %v1628, %v1627
    %v1684 = vpack.c.b16 %v1630, %v1629
    %v1685 = vpack.c.b16 %v1632, %v1631
    %v1686 = vpack.c.b16 %v1634, %v1633
    %v1687 = vpack.c.b16 %v1636, %v1635
    %v1688 = vpack.c.b16 %v1638, %v1637
    %v1689 = vpack.c.b16 %v1640, %v1639
    %v1690 = vpack.c.b16 %v1642, %v1641
    %v1691 = vpack.c.b16 %v1644, %v1643
    %v1692 = vpack.c.b16 %v1646, %v1645
    %v1693 = vpack.c.b16 %v1648, %v1647
    %v1694 = vpack.c.b16 %v1650, %v1649
    %v1695 = vpack.c.b16 %v1652, %v1651
    %v1696 = vpack.c.b16 %v1654, %v1653
    %v1697 = vpack.c.b16 %v1656, %v1655
    %v1698 = vpack.c.b16 %v1658, %v1657
    %v1699 = vpack.c.b16 %v1660, %v1659
    %v1700 = vpack.c.b16 %v1662, %v1661
    %v1701 = vpack.c.b16 %v1664, %v1663
    %v1702 = vpack.c.b16 %v1666, %v1665
    %v1703 = vpack.c.b16 %v1668, %v1667
    %v1704 = vpack.c.b16 %v1670, %v1669
    %v1705 = vpack.c.b16 %v1672, %v1671
    %v1706 = vpack.c.b16 %v1674, %v1673
    %1739 = vmatprep.subr.bf16.mxu0 0
    %1740 = vmatpush1.bf16.msra.mxu0 %v1682
    %1741 = vmatprep.subr.bf16.mxu0 0
    %1742 = vmatpush1.bf16.msra.mxu0 %v1681
    %1743 = vmatprep.subr.bf16.mxu0 0
    %1744 = vmatpush1.bf16.msra.mxu0 %v1680
    %1745 = vmatprep.subr.bf16.mxu0 0
    %1746 = vmatpush1.bf16.msra.mxu0 %v1679
    %1747 = vmatprep.subr.bf16.mxu0 0
    %1748 = vmatpush1.bf16.msra.mxu0 %v1678
    %1749 = vmatprep.subr.bf16.mxu0 0
    %1750 = vmatpush1.bf16.msra.mxu0 %v1677
    %1751 = vmatprep.subr.bf16.mxu0 0
    %1752 = vmatpush1.bf16.msra.mxu0 %v1676
    %1753 = vmatprep.subr.bf16.mxu0 0
    %1754 = vmatpush1.bf16.msra.mxu0 %v1675
    %1755 = vmatprep.subr.bf16.mxu0 0
    %1756 = vmatpush2.bf16.msra.mxu0 %v1690
    %1757 = vmatprep.subr.bf16.mxu0 0
    %1758 = vmatpush2.bf16.msra.mxu0 %v1689
    %1759 = vmatprep.subr.bf16.mxu0 0
    %1760 = vmatpush2.bf16.msra.mxu0 %v1688
    %1761 = vmatprep.subr.bf16.mxu0 0
    %1762 = vmatpush2.bf16.msra.mxu0 %v1687
    %1763 = vmatprep.subr.bf16.mxu0 0
    %1764 = vmatpush2.bf16.msra.mxu0 %v1686
    %1765 = vmatprep.subr.bf16.mxu0 0
    %1766 = vmatpush2.bf16.msra.mxu0 %v1685
    %1767 = vmatprep.subr.bf16.mxu0 0
    %1768 = vmatpush2.bf16.msra.mxu0 %v1684
    %1769 = vmatprep.subr.bf16.mxu0 0
    %1770 = vmatpush2.bf16.msra.mxu0 %v1683
    %1771 = vmatprep.mubr.bf16.mxu0 %v1525
    %1772 = vmatmul.mubr.bf16.gmra.mxu0 %v1524
    %v1773 = vpop.f32.mrf.mxu0
    %v1774 = vadd.f32 %v1545, %v1773
    %v1775 = vpop.f32.mrf.mxu0
    %v1776 = vpop.f32.mrf.mxu0
    %v1777 = vadd.f32 %v1545, %v1776
    %v1778 = vpop.f32.mrf.mxu0
    %1779 = vmatprep.mubr.bf16.mxu0 %v1529
    %1780 = vmatmul.mubr.bf16.gmra.mxu0 %v1528
    %v1781 = vpop.f32.mrf.mxu0
    %v1782 = vadd.f32 %v1545, %v1781
    %v1783 = vpop.f32.mrf.mxu0
    %v1784 = vpop.f32.mrf.mxu0
    %v1785 = vadd.f32 %v1545, %v1784
    %v1786 = vpop.f32.mrf.mxu0
    %1787 = vmatprep.mubr.bf16.mxu0 %v1533
    %1788 = vmatmul.mubr.bf16.gmra.mxu0 %v1532
    %v1789 = vpop.f32.mrf.mxu0
    %v1790 = vadd.f32 %v1545, %v1789
    %v1791 = vpop.f32.mrf.mxu0
    %v1792 = vpop.f32.mrf.mxu0
    %v1793 = vadd.f32 %v1545, %v1792
    %v1794 = vpop.f32.mrf.mxu0
    %1795 = vmatprep.mubr.bf16.mxu0 %v1537
    %1796 = vmatmul.mubr.bf16.gmra.mxu0 %v1536
    %v1797 = vpop.f32.mrf.mxu0
    %v1798 = vadd.f32 %v1545, %v1797
    %v1799 = vpop.f32.mrf.mxu0
    %v1800 = vpop.f32.mrf.mxu0
    %v1801 = vadd.f32 %v1545, %v1800
    %v1802 = vpop.f32.mrf.mxu0
    %1803 = vdwg.mxu0
    %1804 = vmatprep.subr.bf16.mxu0 0
    %1805 = vmatpush1.bf16.msra.mxu0 %v1698
    %1806 = vmatprep.subr.bf16.mxu0 0
    %1807 = vmatpush1.bf16.msra.mxu0 %v1697
    %1808 = vmatprep.subr.bf16.mxu0 0
    %1809 = vmatpush1.bf16.msra.mxu0 %v1696
    %1810 = vmatprep.subr.bf16.mxu0 0
    %1811 = vmatpush1.bf16.msra.mxu0 %v1695
    %1812 = vmatprep.subr.bf16.mxu0 0
    %1813 = vmatpush1.bf16.msra.mxu0 %v1694
    %1814 = vmatprep.subr.bf16.mxu0 0
    %1815 = vmatpush1.bf16.msra.mxu0 %v1693
    %1816 = vmatprep.subr.bf16.mxu0 0
    %1817 = vmatpush1.bf16.msra.mxu0 %v1692
    %1818 = vmatprep.subr.bf16.mxu0 0
    %1819 = vmatpush1.bf16.msra.mxu0 %v1691
    %1820 = vmatprep.subr.bf16.mxu0 0
    %1821 = vmatpush2.bf16.msra.mxu0 %v1706
    %1822 = vmatprep.subr.bf16.mxu0 0
    %1823 = vmatpush2.bf16.msra.mxu0 %v1705
    %1824 = vmatprep.subr.bf16.mxu0 0
    %1825 = vmatpush2.bf16.msra.mxu0 %v1704
    %1826 = vmatprep.subr.bf16.mxu0 0
    %1827 = vmatpush2.bf16.msra.mxu0 %v1703
    %1828 = vmatprep.subr.bf16.mxu0 0
    %1829 = vmatpush2.bf16.msra.mxu0 %v1702
    %1830 = vmatprep.subr.bf16.mxu0 0
    %1831 = vmatpush2.bf16.msra.mxu0 %v1701
    %1832 = vmatprep.subr.bf16.mxu0 0
    %1833 = vmatpush2.bf16.msra.mxu0 %v1700
    %1834 = vmatprep.subr.bf16.mxu0 0
    %1835 = vmatpush2.bf16.msra.mxu0 %v1699
    %1836 = vmatprep.mubr.bf16.mxu0 %v1527
    %1837 = vmatmul.mubr.bf16.gmra.mxu0 %v1526
    %v1838 = vpop.f32.mrf.mxu0
    %v1839 = vadd.f32 %v1774, %v1838
    %v1840 = vpop.f32.mrf.mxu0
    %v1841 = vpop.f32.mrf.mxu0
    %v1842 = vadd.f32 %v1777, %v1841
    %v1843 = vpop.f32.mrf.mxu0
    %1844 = vmatprep.mubr.bf16.mxu0 %v1531
    %1845 = vmatmul.mubr.bf16.gmra.mxu0 %v1530
    %v1846 = vpop.f32.mrf.mxu0
    %v1847 = vadd.f32 %v1782, %v1846
    %v1848 = vpop.f32.mrf.mxu0
    %v1849 = vpop.f32.mrf.mxu0
    %v1850 = vadd.f32 %v1785, %v1849
    %v1851 = vpop.f32.mrf.mxu0
    %1852 = vmatprep.mubr.bf16.mxu0 %v1535
    %1853 = vmatmul.mubr.bf16.gmra.mxu0 %v1534
    %v1854 = vpop.f32.mrf.mxu0
    %v1855 = vadd.f32 %v1790, %v1854
    %v1856 = vpop.f32.mrf.mxu0
    %v1857 = vpop.f32.mrf.mxu0
    %v1858 = vadd.f32 %v1793, %v1857
    %v1859 = vpop.f32.mrf.mxu0
    %1860 = vmatprep.mubr.bf16.mxu0 %v1539
    %1861 = vmatmul.mubr.bf16.gmra.mxu0 %v1538
    %v1862 = vpop.f32.mrf.mxu0
    %v1863 = vadd.f32 %v1798, %v1862
    %v1864 = vpop.f32.mrf.mxu0
    %v1865 = vpop.f32.mrf.mxu0
    %v1866 = vadd.f32 %v1801, %v1865
    %v1867 = vpop.f32.mrf.mxu0
    %1868 = vdwg.mxu0
    %1869 = vst [vmem:[#allocation7] sm:$0xff] %v1839
    %1870 = vst [vmem:[#allocation7 + $0x8] sm:$0xff] %v1842
    %1871 = vst [vmem:[#allocation7 + $0x10] sm:$0xff] %v1847
    %1872 = vst [vmem:[#allocation7 + $0x18] sm:$0xff] %v1850
    %1873 = vst [vmem:[#allocation7 + $0x20] sm:$0xff] %v1855
    %1874 = vst [vmem:[#allocation7 + $0x28] sm:$0xff] %v1858
    %1875 = vst [vmem:[#allocation7 + $0x30] sm:$0xff] %v1863
    %1876 = vst [vmem:[#allocation7 + $0x38] sm:$0xff] %v1866
    // Predicated region
    $region38: #{tpu_custom_call.1} parent=1 // pred_check
      _
    $region39: #{tpu_custom_call.1} parent=1 // pred_check_branch
      %1878 = sbr.rel (0) target = $region41
    $region40: #{tpu_custom_call.1} parent=1 // pred_region
      %s1880 = ssub.s32 1024, 1024
      %1881 = vsyncadd [#allocation4], %s1880
      %s1882 = sshll.u32 [#allocation7], 4
      %s1883 = int_to_ptr.vmem [resolvable:$true] %s1882
      %1888 = dma.vmem_to_hbm [thread:$0]  %s1883, 1024, %s7, [#allocation4], 128, 128, 8
    $region41: #{tpu_custom_call.1} parent=1 // pred_fallthru
      _
    // Predicated region
    $region42: #{tpu_custom_call.1} parent=1 // pred_check
      _
    $region43: #{tpu_custom_call.1} parent=1 // pred_check_branch
      %1890 = sbr.rel (0) target = $region45
    $region44: #{tpu_custom_call.1} parent=1 // pred_region
      %1891 = dma.done [#allocation4], 1024
    $region45: #{tpu_custom_call.1} parent=1 // pred_fallthru
      _
    %1892 = vsyncpa [#allocation3], 1
    %1893 = vsyncpa [#allocation6], 1
    %1894 = vsyncpa [#allocation4], 1

</llo_original>
